<compile_context>
chip_gen: v7x
topology: tpu7x:2x2x1
jax: 0.10.0
libtpu: 0.0.40
codegen_flags: <defaults>
</compile_context>

<pallas_src>
import functools
import math

import jax
import jax.numpy as jnp
from jax import lax
from jax.experimental import pallas as pl
from jax.experimental.pallas import tpu as pltpu

NEG_INF = -1e30   # additive key-padding bias; exp() underflows to exactly 0 in f32
LN_EPS = 1e-5     # nn.LayerNorm default


def mol_attn_kernel(*refs, num_heads, with_attn):
    if with_attn:
        (x_ref, bias_ref, w_in_ref, b_in_ref, w_out_ref, b_out_ref,
         ln_g_ref, ln_b_ref, o_ref, attn_ref, ctx_ref) = refs
    else:
        (x_ref, bias_ref, w_in_ref, b_in_ref, w_out_ref, b_out_ref,
         ln_g_ref, ln_b_ref, o_ref, ctx_ref) = refs
        attn_ref = None

    x = x_ref[...]            # (Bb, S, E) f32 — a block of Bb batch elements
    bias = bias_ref[...]      # (Bb, 1, S) f32 additive key-padding bias (0 or -1e30)
    Bb, S, E = x.shape
    H = num_heads
    Dh = E // H
    scale = 1.0 / math.sqrt(Dh)

    # Fused QKV projection: one (Bb*S, E) @ (E, 3E) MXU matmul, bf16 operands, f32 accumulation.
    qkv = jnp.dot(x.astype(jnp.bfloat16).reshape(Bb * S, E),
                  w_in_ref[...].astype(jnp.bfloat16),
                  preferred_element_type=jnp.float32)
    qkv = (qkv + b_in_ref[...]).reshape(Bb, S, 3 * E)        # bias add in f32

    attn_acc = None
    # TODO(synk): for H>1 with large E, switch to lax.fori_loop(..., unroll=True) over 128-padded
    #             head blocks and a VMEM attn accumulator (keeps vreg live ranges bounded).
    for h in range(H):        # static unroll over heads (H defaults to 1 in the module)
        lo = h * Dh
        qh = (qkv[:, :, lo:lo + Dh] * scale).astype(jnp.bfloat16)   # scale q (S*Dh), not scores (S*S)
        kh = qkv[:, :, E + lo:E + lo + Dh].astype(jnp.bfloat16)
        vh = qkv[:, :, 2 * E + lo:2 * E + lo + Dh].astype(jnp.bfloat16)

        # Batched scores over the Bb block; f32 accumulate; mask add in f32.
        s = jnp.einsum("bqd,bkd->bqk", qh, kh,
                       preferred_element_type=jnp.float32) + bias
        m = jnp.max(s, axis=-1, keepdims=True)
        e = jnp.exp(s - m)                                   # masked keys underflow to exactly 0
        denom = jnp.sum(e, axis=-1, keepdims=True)
        p = e * pl.reciprocal(denom, approx=True)            # EUP reciprocal, frees VALU slots

        if attn_ref is not None:
            attn_acc = p if attn_acc is None else attn_acc + p

        ctx_h = jnp.einsum("bqk,bkd->bqd", p.astype(jnp.bfloat16), vh,
                           preferred_element_type=jnp.float32)
        ctx_ref[:, :, lo:lo + Dh] = ctx_h                    # VMEM scratch write — no lane concat

    # Output projection (bf16 operands, f32 accumulation).
    ctx = ctx_ref[...]                                       # (Bb, S, E) f32
    proj = jnp.dot(ctx.astype(jnp.bfloat16).reshape(Bb * S, E),
                   w_out_ref[...].astype(jnp.bfloat16),
                   preferred_element_type=jnp.float32)
    proj = (proj + b_out_ref[...]).reshape(Bb, S, E)

    # AddNorm: LayerNorm(x + dropout(attn_x)); dropout is identity (eval / rate 0). All stats f32.
    y = x + proj
    mu = jnp.mean(y, axis=-1, keepdims=True)
    var = jnp.mean(jnp.square(y - mu), axis=-1, keepdims=True)
    out = (y - mu) * lax.rsqrt(var + LN_EPS) * ln_g_ref[...] + ln_b_ref[...]

    o_ref[...] = out.astype(o_ref.dtype)
    if attn_ref is not None:
        attn_ref[...] = (attn_acc * (1.0 / H)).astype(attn_ref.dtype)   # PyTorch averages over heads


def _pick_block_b(B):
    """Largest batch block <=16 that divides B while keeping >=4 grid steps when possible."""
    target = max(1, min(16, B // 4))
    for bb in range(target, 0, -1):
        if B % bb == 0:
            return bb
    return 1


def molecular_attention(x, key_padding_mask, params, *, num_heads=1, block_b=None,
                        return_attn_weights=True):
    """x: (B, S, E) f32; key_padding_mask: (B, S) bool (True = ignore key)."""
    B, S, E = x.shape
    assert E % num_heads == 0, "embed_dim must be divisible by num_heads"
    if block_b is None:
        block_b = _pick_block_b(B)
    assert B % block_b == 0, "batch block must divide batch size"

    # Precompute the additive mask bias once in the wrapper (f32, so -1e30 stays exact).
    mask_bias = jnp.where(key_padding_mask, NEG_INF, 0.0).astype(jnp.float32).reshape(B, 1, S)

    # Explicit scoped-VMEM budget from actual tile sizes; cap at 64 MiB so it is valid on
    # v7x (64 MiB physical) as well as v5e/v6e (128 MiB physical).
    itemsize = 4
    weight_bytes = (E * 3 * E + 3 * E + E * E + 3 * E) * itemsize          # single-buffered (Buffered(1))
    per_step = (block_b * S * E + block_b * S + block_b * S * E
                + (block_b * S * S if return_attn_weights else 0)) * itemsize
    scratch_bytes = block_b * S * E * itemsize
    needed = weight_bytes + 2 * per_step + scratch_bytes                   # 2x: double-buffered tiles
    vmem_limit = int(min(max(2 * needed + (8 << 20), 32 << 20), 64 << 20))

    resident = dict(pipeline_mode=pl.Buffered(1))   # single VMEM buffer for replicated params
    in_specs = [
        pl.BlockSpec((block_b, S, E), lambda b: (b, 0, 0)),            # x tile (Bb batch elements)
        pl.BlockSpec((block_b, 1, S), lambda b: (b, 0, 0)),            # key-padding bias tile
        pl.BlockSpec((E, 3 * E), lambda b: (0, 0), **resident),        # fused QKV weight (replicated)
        pl.BlockSpec((1, 3 * E), lambda b: (0, 0), **resident),        # fused QKV bias
        pl.BlockSpec((E, E), lambda b: (0, 0), **resident),            # out_proj weight
        pl.BlockSpec((1, E), lambda b: (0, 0), **resident),            # out_proj bias
        pl.BlockSpec((1, E), lambda b: (0, 0), **resident),            # LayerNorm gamma
        pl.BlockSpec((1, E), lambda b: (0, 0), **resident),            # LayerNorm beta
    ]
    out_shape = [jax.ShapeDtypeStruct((B, S, E), x.dtype)]
    out_specs = [pl.BlockSpec((block_b, S, E), lambda b: (b, 0, 0))]
    if return_attn_weights:
        out_shape.append(jax.ShapeDtypeStruct((B, S, S), x.dtype))
        out_specs.append(pl.BlockSpec((block_b, S, S), lambda b: (b, 0, 0)))

    kernel = functools.partial(mol_attn_kernel, num_heads=num_heads,
                               with_attn=return_attn_weights)
    results = pl.pallas_call(
        kernel,
        out_shape=tuple(out_shape),
        grid_spec=pltpu.PrefetchScalarGridSpec(
            num_scalar_prefetch=0,
            grid=(B // block_b,),    # >=4 steps in the demo: pipelining depth + megacore sharding
            in_specs=in_specs,
            out_specs=tuple(out_specs),
            scratch_shapes=[pltpu.VMEM((block_b, S, E), jnp.float32)],   # per-head context slab
        ),
        compiler_params=pltpu.CompilerParams(
            dimension_semantics=("parallel",),
            vmem_limit_bytes=vmem_limit,
        ),
    )(x, mask_bias, params["w_in"], params["b_in"], params["w_out"],
      params["b_out"], params["ln_g"], params["ln_b"])

    if return_attn_weights:
        return results
    return results[0], None


def molecular_attention_ref(x, key_padding_mask, params, *, num_heads=1, emulate_bf16=False):
    """Pure-JAX reference. emulate_bf16=True mirrors the kernel's bf16-operand / f32-accum matmuls."""
    B, S, E = x.shape
    H = num_heads
    Dh = E // H
    scale = 1.0 / math.sqrt(Dh)
    cast = (lambda t: t.astype(jnp.bfloat16)) if emulate_bf16 else (lambda t: t)

    qkv = jnp.einsum("bse,ef->bsf", cast(x), cast(params["w_in"]),
                     preferred_element_type=jnp.float32) + params["b_in"]
    q, k, v = qkv[..., :E], qkv[..., E:2 * E], qkv[..., 2 * E:]

    def heads(t):                                            # (B,S,E) -> (B,H,S,Dh)
        return t.reshape(B, S, H, Dh).transpose(0, 2, 1, 3)

    qh, kh, vh = heads(q), heads(k), heads(v)
    s = jnp.einsum("bhqd,bhkd->bhqk", cast(qh * scale), cast(kh),
                   preferred_element_type=jnp.float32)
    s = s + jnp.where(key_padding_mask, NEG_INF, 0.0)[:, None, None, :]
    m = s.max(-1, keepdims=True)
    e = jnp.exp(s - m)
    p = e / e.sum(-1, keepdims=True)
    ctx = jnp.einsum("bhqk,bhkd->bhqd", cast(p), cast(vh),
                     preferred_element_type=jnp.float32)
    ctx = ctx.transpose(0, 2, 1, 3).reshape(B, S, E)
    proj = jnp.einsum("bse,ef->bsf", cast(ctx), cast(params["w_out"]),
                      preferred_element_type=jnp.float32) + params["b_out"]

    y = x + proj                                             # dropout identity in eval
    mu = y.mean(-1, keepdims=True)
    var = jnp.square(y - mu).mean(-1, keepdims=True)
    out = (y - mu) * lax.rsqrt(var + LN_EPS) * params["ln_g"] + params["ln_b"]
    return out, p.mean(axis=1)                               # average attn weights over heads


if __name__ == "__main__":
    key = jax.random.PRNGKey(0)
    kx, kwi, kbi, kwo, kbo, kg, kb2 = jax.random.split(key, 7)

    B, S, E, H = 32, 8, 32, 1     # num_heads=1 is the module default; Bb=8 -> grid=(4,)

    x = jax.random.normal(kx, (B, S, E), dtype=jnp.float32)
    # key_padding_mask: True = this molecule position is padding (PyTorch convention).
    lengths = 5 + (jnp.arange(B) % 4)                          # 5..8 valid keys; never all-masked
    key_padding_mask = jnp.arange(S)[None, :] >= lengths[:, None]

    bound = 1.0 / math.sqrt(E)
    params = {
        "w_in": jax.random.uniform(kwi, (E, 3 * E), jnp.float32, -bound, bound),   # in_proj_weight.T
        "b_in": jax.random.uniform(kbi, (1, 3 * E), jnp.float32, -bound, bound),   # in_proj_bias
        "w_out": jax.random.uniform(kwo, (E, E), jnp.float32, -bound, bound),      # out_proj.weight.T
        "b_out": jax.random.uniform(kbo, (1, E), jnp.float32, -bound, bound),      # out_proj.bias
        "ln_g": 1.0 + 0.1 * jax.random.normal(kg, (1, E), jnp.float32),            # LayerNorm.weight
        "ln_b": 0.1 * jax.random.normal(kb2, (1, E), jnp.float32),                 # LayerNorm.bias
    }

    out, attn_w = molecular_attention(x, key_padding_mask, params, num_heads=H)
    out, attn_w = jax.block_until_ready((out, attn_w))

    ref_bf_out, ref_bf_attn = molecular_attention_ref(x, key_padding_mask, params,
                                                      num_heads=H, emulate_bf16=True)
    ref_f32_out, ref_f32_attn = molecular_attention_ref(x, key_padding_mask, params,
                                                        num_heads=H, emulate_bf16=False)

    assert out.shape == (B, S, E) and attn_w.shape == (B, S, S)
    # Tight check vs a reference using the same bf16-operand/f32-accum matmuls.
    assert jnp.allclose(out, ref_bf_out, atol=2e-2, rtol=2e-2)
    assert jnp.allclose(attn_w, ref_bf_attn, atol=2e-2, rtol=2e-2)
    # Loose sanity check vs the full-f32 (PyTorch-semantics) reference.
    assert jnp.allclose(out, ref_f32_out, atol=5e-2, rtol=5e-2)
    assert jnp.allclose(attn_w, ref_f32_attn, atol=5e-2, rtol=5e-2)
    # Padded keys must receive zero attention weight (batch 0 has keys 5..7 masked).
    assert float(jnp.max(attn_w[0, :, 5:])) < 1e-6

    # Optional-output path: skip the O(S^2) attention-weights writeback entirely.
    out_only, _ = molecular_attention(x, key_padding_mask, params, num_heads=H,
                                      return_attn_weights=False)
    out_only = jax.block_until_ready(out_only)
    assert jnp.allclose(out_only, out, atol=1e-5, rtol=1e-5)

    print("KERNEL_OK")
</pallas_src>

<mosaic_0001>
module attributes {stable_mosaic.version = 11 : i64} {
  func.func @mol_attn_kernel(%arg0: i32, %arg1: memref<8x8x32xf32, #tpu.memory_space<vmem>>, %arg2: memref<8x1x8xf32, #tpu.memory_space<vmem>>, %arg3: memref<32x96xf32, #tpu.memory_space<vmem>>, %arg4: memref<1x96xf32, #tpu.memory_space<vmem>>, %arg5: memref<32x32xf32, #tpu.memory_space<vmem>>, %arg6: memref<1x32xf32, #tpu.memory_space<vmem>>, %arg7: memref<1x32xf32, #tpu.memory_space<vmem>>, %arg8: memref<1x32xf32, #tpu.memory_space<vmem>>, %arg9: memref<8x8x32xf32, #tpu.memory_space<vmem>>, %arg10: memref<8x8x8xf32, #tpu.memory_space<vmem>>, %arg11: memref<8x8x32xf32, #tpu.memory_space<vmem>>) attributes {dimension_semantics = [#tpu.dimension_semantics<parallel>], iteration_bounds = array<i64: 4>, scalar_prefetch = 0 : i64, scratch_operands = 1 : i64, tpu.core_type = #tpu.core_type<tc>, window_params = [{transform_indices = @transform_0, window_bounds = array<i64: 8, 8, 32>}, {transform_indices = @transform_1, window_bounds = array<i64: 8, 1, 8>}, {pipeline_mode = #tpu.pipeline_mode<synchronous>, transform_indices = @transform_2, window_bounds = array<i64: 32, 96>}, {pipeline_mode = #tpu.pipeline_mode<synchronous>, transform_indices = @transform_3, window_bounds = array<i64: 1, 96>}, {pipeline_mode = #tpu.pipeline_mode<synchronous>, transform_indices = @transform_4, window_bounds = array<i64: 32, 32>}, {pipeline_mode = #tpu.pipeline_mode<synchronous>, transform_indices = @transform_5, window_bounds = array<i64: 1, 32>}, {pipeline_mode = #tpu.pipeline_mode<synchronous>, transform_indices = @transform_6, window_bounds = array<i64: 1, 32>}, {pipeline_mode = #tpu.pipeline_mode<synchronous>, transform_indices = @transform_7, window_bounds = array<i64: 1, 32>}, {transform_indices = @transform_8, window_bounds = array<i64: 8, 8, 32>}, {transform_indices = @transform_9, window_bounds = array<i64: 8, 8, 8>}]} {
    %c0 = arith.constant 0 : index
    %c0_0 = arith.constant 0 : index
    %c0_1 = arith.constant 0 : index
    %0 = vector.load %arg1[%c0, %c0_0, %c0_1] : memref<8x8x32xf32, #tpu.memory_space<vmem>>, vector<8x8x32xf32>
    %c0_2 = arith.constant 0 : index
    %c0_3 = arith.constant 0 : index
    %c0_4 = arith.constant 0 : index
    %1 = vector.load %arg2[%c0_2, %c0_3, %c0_4] : memref<8x1x8xf32, #tpu.memory_space<vmem>>, vector<8x1x8xf32>
    %2 = arith.truncf %0 : vector<8x8x32xf32> to vector<8x8x32xbf16>
    %3 = vector.shape_cast %2 : vector<8x8x32xbf16> to vector<64x32xbf16>
    %c0_5 = arith.constant 0 : index
    %c0_6 = arith.constant 0 : index
    %4 = vector.load %arg3[%c0_5, %c0_6] : memref<32x96xf32, #tpu.memory_space<vmem>>, vector<32x96xf32>
    %5 = arith.truncf %4 : vector<32x96xf32> to vector<32x96xbf16>
    %cst = arith.constant dense<0.000000e+00> : vector<64x96xf32>
    %6 = tpu.matmul %3, %5, %cst {dimension_numbers = #tpu.dot_dimension_numbers<[1], [0], [0], [1], [0, 0, 1, 1], [], []>} : vector<64x32xbf16>, vector<32x96xbf16>, vector<64x96xf32> -> vector<64x96xf32>
    %c0_7 = arith.constant 0 : index
    %c0_8 = arith.constant 0 : index
    %7 = vector.load %arg4[%c0_7, %c0_8] : memref<1x96xf32, #tpu.memory_space<vmem>>, vector<1x96xf32>
    %8 = vector.broadcast %7 : vector<1x96xf32> to vector<64x96xf32>
    %9 = arith.addf %6, %8 : vector<64x96xf32>
    %10 = vector.shape_cast %9 : vector<64x96xf32> to vector<8x8x96xf32>
    %11 = vector.extract_strided_slice %10 {offsets = [0, 0, 0], sizes = [8, 8, 32], strides = [1, 1, 1]} : vector<8x8x96xf32> to vector<8x8x32xf32>
    %cst_9 = arith.constant 0.176776692 : f32
    %12 = vector.broadcast %cst_9 : f32 to vector<8x8x32xf32>
    %13 = arith.mulf %11, %12 : vector<8x8x32xf32>
    %14 = arith.truncf %13 : vector<8x8x32xf32> to vector<8x8x32xbf16>
    %15 = vector.extract_strided_slice %10 {offsets = [0, 0, 32], sizes = [8, 8, 32], strides = [1, 1, 1]} : vector<8x8x96xf32> to vector<8x8x32xf32>
    %16 = arith.truncf %15 : vector<8x8x32xf32> to vector<8x8x32xbf16>
    %17 = vector.extract_strided_slice %10 {offsets = [0, 0, 64], sizes = [8, 8, 32], strides = [1, 1, 1]} : vector<8x8x96xf32> to vector<8x8x32xf32>
    %18 = arith.truncf %17 : vector<8x8x32xf32> to vector<8x8x32xbf16>
    "tpu.trace_start"() <{level = 10 : i32, message = "bqd,bkd->bqk"}> : () -> ()
    %cst_10 = arith.constant dense<0.000000e+00> : vector<8x8x8xf32>
    %19 = tpu.matmul %14, %16, %cst_10 {dimension_numbers = #tpu.dot_dimension_numbers<[2], [2], [1], [1], [0, 0, 0, 1, 1, 1], [0], [0]>} : vector<8x8x32xbf16>, vector<8x8x32xbf16>, vector<8x8x8xf32> -> vector<8x8x8xf32>
    "tpu.trace_stop"() : () -> ()
    %20 = vector.broadcast %1 : vector<8x1x8xf32> to vector<8x8x8xf32>
    %21 = arith.addf %19, %20 : vector<8x8x8xf32>
    %cst_11 = arith.constant dense<0xFF800000> : vector<8x8xf32>
    %22 = vector.multi_reduction <maximumf>, %21, %cst_11 [2] : vector<8x8x8xf32> to vector<8x8xf32>
    %23 = vector.shape_cast %22 : vector<8x8xf32> to vector<8x8x1xf32>
    %24 = vector.broadcast %23 : vector<8x8x1xf32> to vector<8x8x8xf32>
    %25 = arith.subf %21, %24 : vector<8x8x8xf32>
    %26 = math.exp %25 : vector<8x8x8xf32>
    %cst_12 = arith.constant dense<0.000000e+00> : vector<8x8xf32>
    %27 = vector.multi_reduction <add>, %26, %cst_12 [2] : vector<8x8x8xf32> to vector<8x8xf32>
    %28 = vector.shape_cast %27 : vector<8x8xf32> to vector<8x8x1xf32>
    %29 = tpu.reciprocal %28 {approx = true} : vector<8x8x1xf32> -> vector<8x8x1xf32>
    %30 = vector.broadcast %29 : vector<8x8x1xf32> to vector<8x8x8xf32>
    %31 = arith.mulf %26, %30 : vector<8x8x8xf32>
    %32 = arith.truncf %31 : vector<8x8x8xf32> to vector<8x8x8xbf16>
    "tpu.trace_start"() <{level = 10 : i32, message = "bqk,bkd->bqd"}> : () -> ()
    %cst_13 = arith.constant dense<0.000000e+00> : vector<8x8x32xf32>
    %33 = tpu.matmul %32, %18, %cst_13 {dimension_numbers = #tpu.dot_dimension_numbers<[2], [1], [1], [2], [0, 0, 0, 1, 1, 2], [0], [0]>} : vector<8x8x8xbf16>, vector<8x8x32xbf16>, vector<8x8x32xf32> -> vector<8x8x32xf32>
    "tpu.trace_stop"() : () -> ()
    %c0_14 = arith.constant 0 : index
    %c0_15 = arith.constant 0 : index
    %c0_16 = arith.constant 0 : index
    %34 = vector.load %arg11[%c0_14, %c0_15, %c0_16] : memref<8x8x32xf32, #tpu.memory_space<vmem>>, vector<8x8x32xf32>
    tpu.vector_store %arg11[%c0_14, %c0_15, %c0_16], %33 {strides = array<i32>} : memref<8x8x32xf32, #tpu.memory_space<vmem>>, vector<8x8x32xf32>,
    %c0_17 = arith.constant 0 : index
    %c0_18 = arith.constant 0 : index
    %c0_19 = arith.constant 0 : index
    %35 = vector.load %arg11[%c0_17, %c0_18, %c0_19] : memref<8x8x32xf32, #tpu.memory_space<vmem>>, vector<8x8x32xf32>
    %36 = arith.truncf %35 : vector<8x8x32xf32> to vector<8x8x32xbf16>
    %37 = vector.shape_cast %36 : vector<8x8x32xbf16> to vector<64x32xbf16>
    %c0_20 = arith.constant 0 : index
    %c0_21 = arith.constant 0 : index
    %38 = vector.load %arg5[%c0_20, %c0_21] : memref<32x32xf32, #tpu.memory_space<vmem>>, vector<32x32xf32>
    %39 = arith.truncf %38 : vector<32x32xf32> to vector<32x32xbf16>
    %cst_22 = arith.constant dense<0.000000e+00> : vector<64x32xf32>
    %40 = tpu.matmul %37, %39, %cst_22 {dimension_numbers = #tpu.dot_dimension_numbers<[1], [0], [0], [1], [0, 0, 1, 1], [], []>} : vector<64x32xbf16>, vector<32x32xbf16>, vector<64x32xf32> -> vector<64x32xf32>
    %c0_23 = arith.constant 0 : index
    %c0_24 = arith.constant 0 : index
    %41 = vector.load %arg6[%c0_23, %c0_24] : memref<1x32xf32, #tpu.memory_space<vmem>>, vector<1x32xf32>
    %42 = vector.broadcast %41 : vector<1x32xf32> to vector<64x32xf32>
    %43 = arith.addf %40, %42 : vector<64x32xf32>
    %44 = vector.shape_cast %43 : vector<64x32xf32> to vector<8x8x32xf32>
    %45 = arith.addf %0, %44 : vector<8x8x32xf32>
    %cst_25 = arith.constant dense<0.000000e+00> : vector<8x8xf32>
    %46 = vector.multi_reduction <add>, %45, %cst_25 [2] : vector<8x8x32xf32> to vector<8x8xf32>
    %47 = vector.shape_cast %46 : vector<8x8xf32> to vector<8x8x1xf32>
    %cst_26 = arith.constant 3.200000e+01 : f32
    %48 = vector.broadcast %cst_26 : f32 to vector<8x8x1xf32>
    %49 = arith.divf %47, %48 : vector<8x8x1xf32>
    %50 = vector.broadcast %49 : vector<8x8x1xf32> to vector<8x8x32xf32>
    %51 = arith.subf %45, %50 : vector<8x8x32xf32>
    %52 = arith.mulf %51, %51 : vector<8x8x32xf32>
    %cst_27 = arith.constant dense<0.000000e+00> : vector<8x8xf32>
    %53 = vector.multi_reduction <add>, %52, %cst_27 [2] : vector<8x8x32xf32> to vector<8x8xf32>
    %54 = vector.shape_cast %53 : vector<8x8xf32> to vector<8x8x1xf32>
    %cst_28 = arith.constant 3.200000e+01 : f32
    %55 = vector.broadcast %cst_28 : f32 to vector<8x8x1xf32>
    %56 = arith.divf %54, %55 : vector<8x8x1xf32>
    %57 = vector.broadcast %49 : vector<8x8x1xf32> to vector<8x8x32xf32>
    %58 = arith.subf %45, %57 : vector<8x8x32xf32>
    %cst_29 = arith.constant 9.99999974E-6 : f32
    %59 = vector.broadcast %cst_29 : f32 to vector<8x8x1xf32>
    %60 = arith.addf %56, %59 : vector<8x8x1xf32>
    %61 = math.rsqrt %60 : vector<8x8x1xf32>
    %62 = vector.broadcast %61 : vector<8x8x1xf32> to vector<8x8x32xf32>
    %63 = arith.mulf %58, %62 : vector<8x8x32xf32>
    %c0_30 = arith.constant 0 : index
    %c0_31 = arith.constant 0 : index
    %64 = vector.load %arg7[%c0_30, %c0_31] : memref<1x32xf32, #tpu.memory_space<vmem>>, vector<1x32xf32>
    %65 = vector.shape_cast %64 : vector<1x32xf32> to vector<1x1x32xf32>
    %66 = vector.broadcast %65 : vector<1x1x32xf32> to vector<8x8x32xf32>
    %67 = arith.mulf %63, %66 : vector<8x8x32xf32>
    %c0_32 = arith.constant 0 : index
    %c0_33 = arith.constant 0 : index
    %68 = vector.load %arg8[%c0_32, %c0_33] : memref<1x32xf32, #tpu.memory_space<vmem>>, vector<1x32xf32>
    %69 = vector.shape_cast %68 : vector<1x32xf32> to vector<1x1x32xf32>
    %70 = vector.broadcast %69 : vector<1x1x32xf32> to vector<8x8x32xf32>
    %71 = arith.addf %67, %70 : vector<8x8x32xf32>
    %c0_34 = arith.constant 0 : index
    %c0_35 = arith.constant 0 : index
    %c0_36 = arith.constant 0 : index
    %72 = vector.load %arg9[%c0_34, %c0_35, %c0_36] : memref<8x8x32xf32, #tpu.memory_space<vmem>>, vector<8x8x32xf32>
    tpu.vector_store %arg9[%c0_34, %c0_35, %c0_36], %71 {strides = array<i32>} : memref<8x8x32xf32, #tpu.memory_space<vmem>>, vector<8x8x32xf32>,
    %cst_37 = arith.constant 1.000000e+00 : f32
    %73 = vector.broadcast %cst_37 : f32 to vector<8x8x8xf32>
    %74 = arith.mulf %31, %73 : vector<8x8x8xf32>
    %c0_38 = arith.constant 0 : index
    %c0_39 = arith.constant 0 : index
    %c0_40 = arith.constant 0 : index
    %75 = vector.load %arg10[%c0_38, %c0_39, %c0_40] : memref<8x8x8xf32, #tpu.memory_space<vmem>>, vector<8x8x8xf32>
    tpu.vector_store %arg10[%c0_38, %c0_39, %c0_40], %74 {strides = array<i32>} : memref<8x8x8xf32, #tpu.memory_space<vmem>>, vector<8x8x8xf32>,
    return
  }
  func.func @transform_0(%arg0: i32) -> (i32, i32, i32) {
    %c0_i32 = arith.constant 0 : i32
    %c0_i32_0 = arith.constant 0 : i32
    %c0_i32_1 = arith.constant 0 : i32
    return %arg0, %c0_i32, %c0_i32_0 : i32, i32, i32
  }
  func.func @transform_1(%arg0: i32) -> (i32, i32, i32) {
    %c0_i32 = arith.constant 0 : i32
    %c0_i32_0 = arith.constant 0 : i32
    %c0_i32_1 = arith.constant 0 : i32
    return %arg0, %c0_i32, %c0_i32_0 : i32, i32, i32
  }
  func.func @transform_2(%arg0: i32) -> (i32, i32) {
    %c0_i32 = arith.constant 0 : i32
    %c0_i32_0 = arith.constant 0 : i32
    %c0_i32_1 = arith.constant 0 : i32
    return %c0_i32, %c0_i32_0 : i32, i32
  }
  func.func @transform_3(%arg0: i32) -> (i32, i32) {
    %c0_i32 = arith.constant 0 : i32
    %c0_i32_0 = arith.constant 0 : i32
    %c0_i32_1 = arith.constant 0 : i32
    return %c0_i32, %c0_i32_0 : i32, i32
  }
  func.func @transform_4(%arg0: i32) -> (i32, i32) {
    %c0_i32 = arith.constant 0 : i32
    %c0_i32_0 = arith.constant 0 : i32
    %c0_i32_1 = arith.constant 0 : i32
    return %c0_i32, %c0_i32_0 : i32, i32
  }
  func.func @transform_5(%arg0: i32) -> (i32, i32) {
    %c0_i32 = arith.constant 0 : i32
    %c0_i32_0 = arith.constant 0 : i32
    %c0_i32_1 = arith.constant 0 : i32
    return %c0_i32, %c0_i32_0 : i32, i32
  }
  func.func @transform_6(%arg0: i32) -> (i32, i32) {
    %c0_i32 = arith.constant 0 : i32
    %c0_i32_0 = arith.constant 0 : i32
    %c0_i32_1 = arith.constant 0 : i32
    return %c0_i32, %c0_i32_0 : i32, i32
  }
  func.func @transform_7(%arg0: i32) -> (i32, i32) {
    %c0_i32 = arith.constant 0 : i32
    %c0_i32_0 = arith.constant 0 : i32
    %c0_i32_1 = arith.constant 0 : i32
    return %c0_i32, %c0_i32_0 : i32, i32
  }
  func.func @transform_8(%arg0: i32) -> (i32, i32, i32) {
    %c0_i32 = arith.constant 0 : i32
    %c0_i32_0 = arith.constant 0 : i32
    %c0_i32_1 = arith.constant 0 : i32
    return %arg0, %c0_i32, %c0_i32_0 : i32, i32, i32
  }
  func.func @transform_9(%arg0: i32) -> (i32, i32, i32) {
    %c0_i32 = arith.constant 0 : i32
    %c0_i32_0 = arith.constant 0 : i32
    %c0_i32_1 = arith.constant 0 : i32
    return %arg0, %c0_i32, %c0_i32_0 : i32, i32, i32
  }
}

</mosaic_0001>

<llo_original>
// kernel: tpu_custom_call.1
$region0: #{tpu_custom_call.1}
  #allocation0 [shape = 'u32[]', space=smem, size = 0x4, offset = 0x4, fixed_abs, tag = 'smem constant byte address 0x4 - core index']
  #allocation1 [shape = 'u32[144,128]{1,0:T(1,128)}', space=vmem, size = 0x12000, scoped, tag = 'internal scratch']
  #allocation2 [shape = 'f32[8,8,32]{2,1,0:T(8,128)}', space=vmem, size = 0x8000, scoped, tag = 'scratch operand']
  %s0 = inlined_call_operand.hbm [shape: f32[32,8,32], index: 0, kind: input, shape index: {}]
  %s1 = inlined_call_operand.vmem [shape: f32[32,1,8], index: 1, kind: input, shape index: {}]
  %s2 = inlined_call_operand.vmem [shape: f32[32,96], index: 2, kind: input, shape index: {}]
  %s3 = inlined_call_operand.vmem [shape: f32[1,96], index: 3, kind: input, shape index: {}]
  %s4 = inlined_call_operand.hbm [shape: f32[32,32], index: 4, kind: input, shape index: {}]
  %s5 = inlined_call_operand.vmem [shape: f32[1,32], index: 5, kind: input, shape index: {}]
  %s6 = inlined_call_operand.vmem [shape: f32[1,32], index: 6, kind: input, shape index: {}]
  %s7 = inlined_call_operand.vmem [shape: f32[1,32], index: 7, kind: input, shape index: {}]
  %s8 = inlined_call_operand.hbm [shape: f32[32,8,32], index: 8, kind: output, shape index: {0}]
  %s9 = inlined_call_operand.vmem [shape: f32[32,8,8], index: 9, kind: output, shape index: {1}]
  %10 = xla_tuple %s8, %s9
  %s11 = sld [smem:[#allocation0]]
  $region81: #{tpu_custom_call.1} parent=0
    _
  %s13 = ssub.s32 1, %s11
  %s14 = scalar_select 0, %s13, %s11
  $region1: #{tpu_custom_call.1} parent=0
    #allocation3 [shape = 'u8[65536]{0}', space=vmem, size = 0x10000, scoped, tag = 'input window, operand 0']
    #allocation4 [shape = 's32[2]{0}', space=sflag, size = 0x8, scoped, tag = 'scoped memory for tpu_custom_call.1']
    #allocation5 [shape = 's32[2]{0}', space=sflag, size = 0x8, scoped, tag = 'scoped memory for tpu_custom_call.1']
    #allocation6 [shape = 'u8[16384]{0}', space=vmem, size = 0x4000, scoped, tag = 'input window, operand 4, single buffered']
    #allocation7 [shape = 's32[1]{0}', space=sflag, size = 0x4, scoped, tag = 'scoped memory for tpu_custom_call.1']
    #allocation8 [shape = 'u8[65536]{0}', space=vmem, size = 0x10000, scoped, tag = 'output window, operand 0']
    %15 = vsyncpa [#allocation4], 0
    %s16 = scalar_lea.sflag [#allocation4], 1
    %17 = vsyncpa %s16, 0
    %18 = vsyncpa [#allocation7], 0
    %19 = vsyncpa [#allocation5], 0
    %s20 = scalar_lea.sflag [#allocation5], 1
    %21 = vsyncpa %s20, 0
    loop: start=0, step=1, limit=6
    $region2: #{tpu_custom_call.1} parent=1 // loop_pre_header
      _
    $region3: #{tpu_custom_call.1} parent=1 // loop_header
      %s23 = sphi 0, %s27
      %p24 = scmp.ge.s32.totalorder %s23, 6
      %s33 = sphi 0, %s35
      %s36 = sphi 0, %s33
      %s37 = sphi 0, %s36
      %s53 = sphi 0, %s37
      %s59 = sphi 0, %s61
      %s62 = sphi 0, %s59
      %s63 = sphi 0, %s62
      %s79 = sphi 0, %s63
      %s83 = sphi 0, %s83
      %s85 = sphi 0, %s83
      %s86 = sphi 0, %s85
      %s100 = sphi 0, %s86
      %s104 = sphi 0, %s104
      %s106 = sphi 0, %s104
      %s107 = sphi 0, %s106
      %s121 = sphi 0, %s107
      %s125 = sphi 0, %s125
      %s127 = sphi 0, %s125
      %s128 = sphi 0, %s127
      %s142 = sphi 0, %s128
      %s146 = sphi 0, %s146
      %s148 = sphi 0, %s146
      %s149 = sphi 0, %s148
      %s163 = sphi 0, %s149
      %s167 = sphi 0, %s167
      %s169 = sphi 0, %s167
      %s170 = sphi 0, %s169
      %s184 = sphi 0, %s170
      %s188 = sphi 0, %s188
      %s190 = sphi 0, %s188
      %s191 = sphi 0, %s190
      %s205 = sphi 0, %s191
      %s211 = sphi 0, %s213
      %s214 = sphi 0, %s211
      %s215 = sphi 0, %s214
      %s231 = sphi 0, %s215
      %s237 = sphi 0, %s239
      %s240 = sphi 0, %s237
      %s241 = sphi 0, %s240
      %s257 = sphi 0, %s241
    $region4: #{tpu_custom_call.1} parent=1 // loop_header_branch
      %26 = sbr.rel (%p24) target = $region8
    $region5: #{tpu_custom_call.1} parent=1 // loop_body
      %s28 = ssub.s32 %s23, 1
      %s29 = ssub.s32 %s23, 2
      %s30 = sadd.s32 %s23, 1
      %s31 = ssub.s32 %s23, %s30
      %p32 = scmp.eq.s32.totalorder %s31, 0
      %s34 = sadd.s32 %s33, 1
      %s35 = scalar_select %p32, %s33, %s34
      %p38 = pneg %p32
      %p39 = scmp.eq.s32.totalorder %s23, 3
      %p40 = por %p38, %p39
      %p41 = scmp.ne.s32.totalorder %s33, %s36
      %p42 = scmp.eq.s32.totalorder %s23, 0
      %p43 = por %p41, %p42
      %p44 = scmp.ne.s32.totalorder %s33, %s36
      %p45 = scmp.eq.s32.totalorder %s28, 3
      %p46 = por %p44, %p45
      %p47 = scmp.ne.s32.totalorder %s36, %s37
      %p48 = scmp.eq.s32.totalorder %s28, 0
      %p49 = por %p47, %p48
      %p50 = scmp.ne.s32.totalorder %s36, %s37
      %p51 = scmp.eq.s32.totalorder %s29, 3
      %p52 = por %p50, %p51
      %p54 = scmp.ne.s32.totalorder %s37, %s53
      %p55 = scmp.eq.s32.totalorder %s29, 0
      %p56 = por %p54, %p55
      %s57 = ssub.s32 %s23, %s30
      %p58 = scmp.eq.s32.totalorder %s57, 0
      %s60 = sadd.s32 %s59, 1
      %s61 = scalar_select %p58, %s59, %s60
      %p64 = pneg %p58
      %p65 = scmp.eq.s32.totalorder %s23, 3
      %p66 = por %p64, %p65
      %p67 = scmp.ne.s32.totalorder %s59, %s62
      %p68 = scmp.eq.s32.totalorder %s23, 0
      %p69 = por %p67, %p68
      %p70 = scmp.ne.s32.totalorder %s59, %s62
      %p71 = scmp.eq.s32.totalorder %s28, 3
      %p72 = por %p70, %p71
      %p73 = scmp.ne.s32.totalorder %s62, %s63
      %p74 = scmp.eq.s32.totalorder %s28, 0
      %p75 = por %p73, %p74
      %p76 = scmp.ne.s32.totalorder %s62, %s63
      %p77 = scmp.eq.s32.totalorder %s29, 3
      %p78 = por %p76, %p77
      %p80 = scmp.ne.s32.totalorder %s63, %s79
      %p81 = scmp.eq.s32.totalorder %s29, 0
      %p82 = por %p80, %p81
      %s84 = sadd.s32 %s83, 1
      %p87 = scmp.eq.s32.totalorder %s23, 3
      %p88 = scmp.ne.s32.totalorder %s83, %s85
      %p89 = scmp.eq.s32.totalorder %s23, 0
      %p90 = por %p88, %p89
      %p91 = scmp.ne.s32.totalorder %s83, %s85
      %p92 = scmp.eq.s32.totalorder %s28, 3
      %p93 = por %p91, %p92
      %p94 = scmp.ne.s32.totalorder %s85, %s86
      %p95 = scmp.eq.s32.totalorder %s28, 0
      %p96 = por %p94, %p95
      %p97 = scmp.ne.s32.totalorder %s85, %s86
      %p98 = scmp.eq.s32.totalorder %s29, 3
      %p99 = por %p97, %p98
      %p101 = scmp.ne.s32.totalorder %s86, %s100
      %p102 = scmp.eq.s32.totalorder %s29, 0
      %p103 = por %p101, %p102
      %s105 = sadd.s32 %s104, 1
      %p108 = scmp.eq.s32.totalorder %s23, 3
      %p109 = scmp.ne.s32.totalorder %s104, %s106
      %p110 = scmp.eq.s32.totalorder %s23, 0
      %p111 = por %p109, %p110
      %p112 = scmp.ne.s32.totalorder %s104, %s106
      %p113 = scmp.eq.s32.totalorder %s28, 3
      %p114 = por %p112, %p113
      %p115 = scmp.ne.s32.totalorder %s106, %s107
      %p116 = scmp.eq.s32.totalorder %s28, 0
      %p117 = por %p115, %p116
      %p118 = scmp.ne.s32.totalorder %s106, %s107
      %p119 = scmp.eq.s32.totalorder %s29, 3
      %p120 = por %p118, %p119
      %p122 = scmp.ne.s32.totalorder %s107, %s121
      %p123 = scmp.eq.s32.totalorder %s29, 0
      %p124 = por %p122, %p123
      %s126 = sadd.s32 %s125, 1
      %p129 = scmp.eq.s32.totalorder %s23, 3
      %p130 = scmp.ne.s32.totalorder %s125, %s127
      %p131 = scmp.eq.s32.totalorder %s23, 0
      %p132 = por %p130, %p131
      %p133 = scmp.ne.s32.totalorder %s125, %s127
      %p134 = scmp.eq.s32.totalorder %s28, 3
      %p135 = por %p133, %p134
      %p136 = scmp.ne.s32.totalorder %s127, %s128
      %p137 = scmp.eq.s32.totalorder %s28, 0
      %p138 = por %p136, %p137
      %p139 = scmp.ne.s32.totalorder %s127, %s128
      %p140 = scmp.eq.s32.totalorder %s29, 3
      %p141 = por %p139, %p140
      %p143 = scmp.ne.s32.totalorder %s128, %s142
      %p144 = scmp.eq.s32.totalorder %s29, 0
      %p145 = por %p143, %p144
      %s147 = sadd.s32 %s146, 1
      %p150 = scmp.eq.s32.totalorder %s23, 3
      %p151 = scmp.ne.s32.totalorder %s146, %s148
      %p152 = scmp.eq.s32.totalorder %s23, 0
      %p153 = por %p151, %p152
      %p154 = scmp.ne.s32.totalorder %s146, %s148
      %p155 = scmp.eq.s32.totalorder %s28, 3
      %p156 = por %p154, %p155
      %p157 = scmp.ne.s32.totalorder %s148, %s149
      %p158 = scmp.eq.s32.totalorder %s28, 0
      %p159 = por %p157, %p158
      %p160 = scmp.ne.s32.totalorder %s148, %s149
      %p161 = scmp.eq.s32.totalorder %s29, 3
      %p162 = por %p160, %p161
      %p164 = scmp.ne.s32.totalorder %s149, %s163
      %p165 = scmp.eq.s32.totalorder %s29, 0
      %p166 = por %p164, %p165
      %s168 = sadd.s32 %s167, 1
      %p171 = scmp.eq.s32.totalorder %s23, 3
      %p172 = scmp.ne.s32.totalorder %s167, %s169
      %p173 = scmp.eq.s32.totalorder %s23, 0
      %p174 = por %p172, %p173
      %p175 = scmp.ne.s32.totalorder %s167, %s169
      %p176 = scmp.eq.s32.totalorder %s28, 3
      %p177 = por %p175, %p176
      %p178 = scmp.ne.s32.totalorder %s169, %s170
      %p179 = scmp.eq.s32.totalorder %s28, 0
      %p180 = por %p178, %p179
      %p181 = scmp.ne.s32.totalorder %s169, %s170
      %p182 = scmp.eq.s32.totalorder %s29, 3
      %p183 = por %p181, %p182
      %p185 = scmp.ne.s32.totalorder %s170, %s184
      %p186 = scmp.eq.s32.totalorder %s29, 0
      %p187 = por %p185, %p186
      %s189 = sadd.s32 %s188, 1
      %p192 = scmp.eq.s32.totalorder %s23, 3
      %p193 = scmp.ne.s32.totalorder %s188, %s190
      %p194 = scmp.eq.s32.totalorder %s23, 0
      %p195 = por %p193, %p194
      %p196 = scmp.ne.s32.totalorder %s188, %s190
      %p197 = scmp.eq.s32.totalorder %s28, 3
      %p198 = por %p196, %p197
      %p199 = scmp.ne.s32.totalorder %s190, %s191
      %p200 = scmp.eq.s32.totalorder %s28, 0
      %p201 = por %p199, %p200
      %p202 = scmp.ne.s32.totalorder %s190, %s191
      %p203 = scmp.eq.s32.totalorder %s29, 3
      %p204 = por %p202, %p203
      %p206 = scmp.ne.s32.totalorder %s191, %s205
      %p207 = scmp.eq.s32.totalorder %s29, 0
      %p208 = por %p206, %p207
      %s209 = ssub.s32 %s23, %s30
      %p210 = scmp.eq.s32.totalorder %s209, 0
      %s212 = sadd.s32 %s211, 1
      %s213 = scalar_select %p210, %s211, %s212
      %p216 = pneg %p210
      %p217 = scmp.eq.s32.totalorder %s23, 3
      %p218 = por %p216, %p217
      %p219 = scmp.ne.s32.totalorder %s211, %s214
      %p220 = scmp.eq.s32.totalorder %s23, 0
      %p221 = por %p219, %p220
      %p222 = scmp.ne.s32.totalorder %s211, %s214
      %p223 = scmp.eq.s32.totalorder %s28, 3
      %p224 = por %p222, %p223
      %p225 = scmp.ne.s32.totalorder %s214, %s215
      %p226 = scmp.eq.s32.totalorder %s28, 0
      %p227 = por %p225, %p226
      %p228 = scmp.ne.s32.totalorder %s214, %s215
      %p229 = scmp.eq.s32.totalorder %s29, 3
      %p230 = por %p228, %p229
      %p232 = scmp.ne.s32.totalorder %s215, %s231
      %p233 = scmp.eq.s32.totalorder %s29, 0
      %p234 = por %p232, %p233
      %s235 = ssub.s32 %s23, %s30
      %p236 = scmp.eq.s32.totalorder %s235, 0
      %s238 = sadd.s32 %s237, 1
      %s239 = scalar_select %p236, %s237, %s238
      %p242 = pneg %p236
      %p243 = scmp.eq.s32.totalorder %s23, 3
      %p244 = por %p242, %p243
      %p245 = scmp.ne.s32.totalorder %s237, %s240
      %p246 = scmp.eq.s32.totalorder %s23, 0
      %p247 = por %p245, %p246
      %p248 = scmp.ne.s32.totalorder %s237, %s240
      %p249 = scmp.eq.s32.totalorder %s28, 3
      %p250 = por %p248, %p249
      %p251 = scmp.ne.s32.totalorder %s240, %s241
      %p252 = scmp.eq.s32.totalorder %s28, 0
      %p253 = por %p251, %p252
      %p254 = scmp.ne.s32.totalorder %s240, %s241
      %p255 = scmp.eq.s32.totalorder %s29, 3
      %p256 = por %p254, %p255
      %p258 = scmp.ne.s32.totalorder %s241, %s257
      %p259 = scmp.eq.s32.totalorder %s29, 0
      %p260 = por %p258, %p259
      %p261 = scmp.le.s32.totalorder 1, %s23
      %p262 = scmp.lt.s32.totalorder %s23, 5
      %p263 = pnand %p261, %p262
      %p264 = pneg %p263
      // Predicated region
      $region9: #{tpu_custom_call.1} parent=5 // pred_check
        _
      $region10: #{tpu_custom_call.1} parent=5 // pred_check_branch
        %266 = sbr.rel (%p263) target = $region12
      $region11: #{tpu_custom_call.1} parent=5 // pred_region
        %s267 = ssub.s32 %s23, 1
        // Predicated region
        $region13: #{tpu_custom_call.1} parent=11 // pred_check
          %p268 = pneg %p96
        $region14: #{tpu_custom_call.1} parent=11 // pred_check_branch
          %270 = sbr.rel (%p268) target = $region16
        $region15: #{tpu_custom_call.1} parent=11 // pred_region
          _
        $region16: #{tpu_custom_call.1} parent=11 // pred_fallthru
          _
        // Predicated region
        $region17: #{tpu_custom_call.1} parent=11 // pred_check
          %p271 = pneg %p117
        $region18: #{tpu_custom_call.1} parent=11 // pred_check_branch
          %273 = sbr.rel (%p271) target = $region20
        $region19: #{tpu_custom_call.1} parent=11 // pred_region
          _
        $region20: #{tpu_custom_call.1} parent=11 // pred_fallthru
          _
        // Predicated region
        $region21: #{tpu_custom_call.1} parent=11 // pred_check
          %p274 = pneg %p138
        $region22: #{tpu_custom_call.1} parent=11 // pred_check_branch
          %276 = sbr.rel (%p274) target = $region24
        $region23: #{tpu_custom_call.1} parent=11 // pred_region
          %s278 = ssub.s32 512, 512
          %279 = vsyncadd [#allocation7], %s278
          %s280 = sshll.u32 [#allocation6], 4
          %s281 = int_to_ptr.vmem [resolvable:$true] %s280
          %286 = dma.hbm_to_vmem [thread:$0]  %s4, 512, %s281, [#allocation7], 128, 128, 8
        $region24: #{tpu_custom_call.1} parent=11 // pred_fallthru
          _
        // Predicated region
        $region25: #{tpu_custom_call.1} parent=11 // pred_check
          %p287 = pneg %p159
        $region26: #{tpu_custom_call.1} parent=11 // pred_check_branch
          %289 = sbr.rel (%p287) target = $region28
        $region27: #{tpu_custom_call.1} parent=11 // pred_region
          _
        $region28: #{tpu_custom_call.1} parent=11 // pred_fallthru
          _
        // Predicated region
        $region29: #{tpu_custom_call.1} parent=11 // pred_check
          %p290 = pneg %p180
        $region30: #{tpu_custom_call.1} parent=11 // pred_check_branch
          %292 = sbr.rel (%p290) target = $region32
        $region31: #{tpu_custom_call.1} parent=11 // pred_region
          _
        $region32: #{tpu_custom_call.1} parent=11 // pred_fallthru
          _
        // Predicated region
        $region33: #{tpu_custom_call.1} parent=11 // pred_check
          %p293 = pneg %p201
        $region34: #{tpu_custom_call.1} parent=11 // pred_check_branch
          %295 = sbr.rel (%p293) target = $region36
        $region35: #{tpu_custom_call.1} parent=11 // pred_region
          _
        $region36: #{tpu_custom_call.1} parent=11 // pred_fallthru
          _
      $region12: #{tpu_custom_call.1} parent=5 // pred_fallthru
        _
      %p296 = scmp.lt.s32.totalorder %s23, 4
      // Predicated region
      $region37: #{tpu_custom_call.1} parent=5 // pred_check
        %p297 = pneg %p296
      $region38: #{tpu_custom_call.1} parent=5 // pred_check_branch
        %299 = sbr.rel (%p297) target = $region40
      $region39: #{tpu_custom_call.1} parent=5 // pred_region
        // Predicated region
        $region41: #{tpu_custom_call.1} parent=39 // pred_check
          %p300 = pneg %p43
        $region42: #{tpu_custom_call.1} parent=39 // pred_check_branch
          %302 = sbr.rel (%p300) target = $region44
        $region43: #{tpu_custom_call.1} parent=39 // pred_region
          %s303 = sand.u32 %s33, 1
          %s304 = scalar_lea.sflag [#allocation4], %s303
          %s305 = sand.u32 %s33, 1
          %s306 = smul.addr %s305, 64
          %s307 = scalar_lea.vmem [#allocation3], %s306
          %s308 = smul.u32 8, %s23
          %s310 = ssub.s32 1024, 1024
          %311 = vsyncadd %s304, %s310
          %s312 = smul.addr %s308, 128
          %s313 = scalar_lea.hbm %s0, %s312
          %s314 = sshll.u32 %s307, 4
          %s315 = int_to_ptr.vmem [resolvable:$true] %s314
          %320 = dma.hbm_to_vmem [thread:$0]  %s313, 1024, %s315, %s304, 128, 128, 8
        $region44: #{tpu_custom_call.1} parent=39 // pred_fallthru
          _
        // Predicated region
        $region45: #{tpu_custom_call.1} parent=39 // pred_check
          %p321 = pneg %p69
        $region46: #{tpu_custom_call.1} parent=39 // pred_check_branch
          %323 = sbr.rel (%p321) target = $region48
        $region47: #{tpu_custom_call.1} parent=39 // pred_region
          %s324 = smul.u32 8, %s23
          %p325 = scmp.lt.s32.totalorder %s324, 31
          %s326 = scalar_select %p325, %s324, 31
          %s327 = scalar_lea.vmem %s1, %s326
          %s328 = smul.u32 8, %s23
        $region48: #{tpu_custom_call.1} parent=39 // pred_fallthru
          _
      $region40: #{tpu_custom_call.1} parent=5 // pred_fallthru
        _
      %p329 = scmp.le.s32.totalorder 1, %s23
      %p330 = scmp.lt.s32.totalorder %s23, 5
      %p331 = pnand %p329, %p330
      %p332 = pneg %p331
      // Predicated region
      $region49: #{tpu_custom_call.1} parent=5 // pred_check
        _
      $region50: #{tpu_custom_call.1} parent=5 // pred_check_branch
        %334 = sbr.rel (%p331) target = $region52
      $region51: #{tpu_custom_call.1} parent=5 // pred_region
        %s335 = ssub.s32 %s23, 1
        %s336 = sand.u32 %s36, 1
        %s337 = scalar_lea.sflag [#allocation4], %s336
        %s338 = sand.u32 %s36, 1
        %s339 = smul.addr %s338, 64
        %s340 = scalar_lea.vmem [#allocation3], %s339
        // Predicated region
        $region53: #{tpu_custom_call.1} parent=51 // pred_check
          %p341 = pneg %p49
        $region54: #{tpu_custom_call.1} parent=51 // pred_check_branch
          %343 = sbr.rel (%p341) target = $region56
        $region55: #{tpu_custom_call.1} parent=51 // pred_region
          %344 = dma.done %s337, 1024
        $region56: #{tpu_custom_call.1} parent=51 // pred_fallthru
          _
        // Predicated region
        $region57: #{tpu_custom_call.1} parent=51 // pred_check
          %p345 = pneg %p138
        $region58: #{tpu_custom_call.1} parent=51 // pred_check_branch
          %347 = sbr.rel (%p345) target = $region60
        $region59: #{tpu_custom_call.1} parent=51 // pred_region
          %348 = dma.done [#allocation7], 512
        $region60: #{tpu_custom_call.1} parent=51 // pred_fallthru
          _
        %s349 = sand.u32 %s36, 1
        %s350 = scalar_lea.sflag [#allocation4], %s349
        %s351 = sand.u32 %s36, 1
        %s352 = smul.addr %s351, 64
        %s353 = scalar_lea.vmem [#allocation3], %s352
        %p354 = pneg %p49
        %p355 = pneg %p46
        %s356 = smul.u32 8, %s28
        %p357 = scmp.lt.s32.totalorder %s356, 31
        %s358 = scalar_select %p357, %s356, 31
        %s359 = scalar_lea.vmem %s1, %s358
        %p360 = pneg %p75
        %p361 = pneg %p72
        %p362 = pneg %p96
        %p363 = pneg %p93
        %p364 = pneg %p117
        %p365 = pneg %p114
        %p366 = pneg %p138
        %p367 = pneg %p135
        %p368 = pneg %p159
        %p369 = pneg %p156
        %p370 = pneg %p180
        %p371 = pneg %p177
        %p372 = pneg %p201
        %p373 = pneg %p198
        %p374 = pneg %p227
        %p375 = pneg %p224
        %s376 = sand.u32 %s214, 1
        %s377 = scalar_lea.sflag [#allocation5], %s376
        %s378 = sand.u32 %s214, 1
        %s379 = smul.addr %s378, 64
        %s380 = scalar_lea.vmem [#allocation8], %s379
        %p381 = pneg %p253
        %p382 = pneg %p250
        %s383 = smul.u32 8, %s28
        %p384 = scmp.lt.s32.totalorder %s383, 31
        %s385 = scalar_select %p384, %s383, 31
        %s386 = smul.addr %s385, 8
        %s387 = scalar_lea.vmem %s9, %s386
        %s388 = smul.u32 8, %s28
        %s389 = smul.u32 8, %s28
        %p390 = scmp.lt.s32.totalorder %s389, 31
        %s391 = scalar_select %p390, %s389, 31
        %s392 = scalar_lea.vmem %s1, %s391
        %s393 = smul.u32 8, %s28
        %s394 = smul.u32 8, %s28
        %s395 = smul.u32 8, %s28
        %p396 = scmp.lt.s32.totalorder %s395, 31
        %s397 = scalar_select %p396, %s395, 31
        %s398 = smul.addr %s397, 8
        %s399 = scalar_lea.vmem %s9, %s398
        %s400 = smul.u32 8, %s28
        %v402 = vld [vmem:[%s340] sm:$0xff]
        %v403 = vld [vmem:[%s340 + $0x8] sm:$0xff]
        %v404 = vld [vmem:[%s340 + $0x10] sm:$0xff]
        %v405 = vld [vmem:[%s340 + $0x18] sm:$0xff]
        %v406 = vld [vmem:[%s340 + $0x20] sm:$0xff]
        %v407 = vld [vmem:[%s340 + $0x28] sm:$0xff]
        %v408 = vld [vmem:[%s340 + $0x30] sm:$0xff]
        %v409 = vld [vmem:[%s340 + $0x38] sm:$0xff]
        %v410 = vld [vmem:[%s392] sm:$0x1]
        %v411 = vld [vmem:[%s392 + $0x1] sm:$0x1]
        %v412 = vld [vmem:[%s392 + $0x2] sm:$0x1]
        %v413 = vld [vmem:[%s392 + $0x3] sm:$0x1]
        %v414 = vld [vmem:[%s392 + $0x4] sm:$0x1]
        %v415 = vld [vmem:[%s392 + $0x5] sm:$0x1]
        %v416 = vld [vmem:[%s392 + $0x6] sm:$0x1]
        %v417 = vld [vmem:[%s392 + $0x7] sm:$0x1]
        %v418 = vpack.c.bf16 %v402, %v402
        %v419 = vpack.c.bf16 %v403, %v403
        %v420 = vpack.c.bf16 %v404, %v404
        %v421 = vpack.c.bf16 %v405, %v405
        %v422 = vpack.c.bf16 %v406, %v406
        %v423 = vpack.c.bf16 %v407, %v407
        %v424 = vpack.c.bf16 %v408, %v408
        %v425 = vpack.c.bf16 %v409, %v409
        %v426 = vld [vmem:[%s2] sm:$0xff]
        %v427 = vld [vmem:[%s2 + $0x8] sm:$0xff]
        %v428 = vld [vmem:[%s2 + $0x10] sm:$0xff]
        %v429 = vld [vmem:[%s2 + $0x18] sm:$0xff]
        %v430 = vpack.c.bf16 %v427, %v426
        %v431 = vpack.c.bf16 %v429, %v428
        %v432 = vld [vmem:[%s3] sm:$0x1]
        %v434 = vlaneseq
        %v435 = vshrl.u32 %v434, 7
        %v436 = vsub.s32 0, %v435
        %v437 = vrot.slane %v432, %v436
        %v447 = vunpack.c.l.b16 %v418
        %v448 = vunpack.c.l.b16 %v419
        %v449 = vunpack.c.l.b16 %v420
        %v450 = vunpack.c.l.b16 %v421
        %v451 = vunpack.c.l.b16 %v422
        %v452 = vunpack.c.l.b16 %v423
        %v453 = vunpack.c.l.b16 %v424
        %v454 = vunpack.c.l.b16 %v425
        %v455 = vpack.c.b16 %v448, %v447
        %v456 = vpack.c.b16 %v450, %v449
        %v457 = vpack.c.b16 %v452, %v451
        %v458 = vpack.c.b16 %v454, %v453
        %vm459 = vcmask 261120
        %v461 = vsel %vm459, %v455, 0
        %v464 = vsel %vm459, %v456, 0
        %v467 = vsel %vm459, %v457, 0
        %v470 = vsel %vm459, %v458, 0
        %472 = vmatprep.subr.bf16.mxu0 0
        %473 = vmatpush1.bf16.msra.mxu0 %v430
        %474 = vmatprep.subr.bf16.mxu0 0
        %475 = vmatpush1.bf16.msra.mxu0 %v431
        %476 = vmatprep.subr.bf16.mxu0 0
        %477 = vmatpush1.bf16.msra.mxu0 0
        %478 = vmatprep.subr.bf16.mxu0 0
        %479 = vmatpush1.bf16.msra.mxu0 0
        %480 = vmatprep.subr.bf16.mxu0 0
        %481 = vmatpush1.bf16.msra.mxu0 0
        %482 = vmatprep.subr.bf16.mxu0 0
        %483 = vmatpush1.bf16.msra.mxu0 0
        %484 = vmatprep.subr.bf16.mxu0 0
        %485 = vmatpush1.bf16.msra.mxu0 0
        %486 = vmatprep.subr.bf16.mxu0 0
        %487 = vmatpush1.bf16.msra.mxu0 0
        %488 = vmatprep.subr.bf16.mxu0 0
        %489 = vmatpush1.bf16.msra.mxu0 0
        %490 = vmatprep.subr.bf16.mxu0 0
        %491 = vmatpush1.bf16.msra.mxu0 0
        %492 = vmatprep.subr.bf16.mxu0 0
        %493 = vmatpush1.bf16.msra.mxu0 0
        %494 = vmatprep.subr.bf16.mxu0 0
        %495 = vmatpush1.bf16.msra.mxu0 0
        %496 = vmatprep.subr.bf16.mxu0 0
        %497 = vmatpush1.bf16.msra.mxu0 0
        %498 = vmatprep.subr.bf16.mxu0 0
        %499 = vmatpush1.bf16.msra.mxu0 0
        %500 = vmatprep.subr.bf16.mxu0 0
        %501 = vmatpush1.bf16.msra.mxu0 0
        %502 = vmatprep.subr.bf16.mxu0 0
        %503 = vmatpush1.bf16.msra.mxu0 0
        %504 = vmatprep.mubr.bf16.mxu0 0
        %505 = vmatmul.mubr.bf16.gmra.mrb[0].mxu0 %v461
        %v506 = vpop.f32.mrb[0].mxu0
        %v507 = vadd.f32 %v437, %v506
        %v508 = vpop.f32.mrb[0].mxu0
        %v509 = vpop.f32.mrb[0].mxu0
        %v510 = vadd.f32 %v437, %v509
        %v511 = vpop.f32.mrb[0].mxu0
        %512 = vmatprep.mubr.bf16.mxu0 0
        %513 = vmatmul.mubr.bf16.gmra.mrb[0].mxu0 %v464
        %v514 = vpop.f32.mrb[0].mxu0
        %v515 = vadd.f32 %v437, %v514
        %v516 = vpop.f32.mrb[0].mxu0
        %v517 = vpop.f32.mrb[0].mxu0
        %v518 = vadd.f32 %v437, %v517
        %v519 = vpop.f32.mrb[0].mxu0
        %520 = vmatprep.mubr.bf16.mxu0 0
        %521 = vmatmul.mubr.bf16.gmra.mrb[0].mxu0 %v467
        %v522 = vpop.f32.mrb[0].mxu0
        %v523 = vadd.f32 %v437, %v522
        %v524 = vpop.f32.mrb[0].mxu0
        %v525 = vpop.f32.mrb[0].mxu0
        %v526 = vadd.f32 %v437, %v525
        %v527 = vpop.f32.mrb[0].mxu0
        %528 = vmatprep.mubr.bf16.mxu0 0
        %529 = vmatmul.mubr.bf16.gmra.mrb[0].mxu0 %v470
        %v530 = vpop.f32.mrb[0].mxu0
        %v531 = vadd.f32 %v437, %v530
        %v532 = vpop.f32.mrb[0].mxu0
        %v533 = vpop.f32.mrb[0].mxu0
        %v534 = vadd.f32 %v437, %v533
        %v535 = vpop.f32.mrb[0].mxu0
        %536 = vdwg.mxu0
        %v537 = vmul.f32 %v507, 0.17677669
        %v538 = vmul.f32 %v510, 0.17677669
        %v539 = vmul.f32 %v515, 0.17677669
        %v540 = vmul.f32 %v518, 0.17677669
        %v541 = vmul.f32 %v523, 0.17677669
        %v542 = vmul.f32 %v526, 0.17677669
        %v543 = vmul.f32 %v531, 0.17677669
        %v544 = vmul.f32 %v534, 0.17677669
        %v545 = vpack.c.bf16 %v537, %v537
        %v546 = vpack.c.bf16 %v538, %v538
        %v547 = vpack.c.bf16 %v539, %v539
        %v548 = vpack.c.bf16 %v540, %v540
        %v549 = vpack.c.bf16 %v541, %v541
        %v550 = vpack.c.bf16 %v542, %v542
        %v551 = vpack.c.bf16 %v543, %v543
        %v552 = vpack.c.bf16 %v544, %v544
        %v553 = vpack.c.bf16 %v507, %v507
        %v554 = vpack.c.bf16 %v510, %v510
        %v555 = vpack.c.bf16 %v515, %v515
        %v556 = vpack.c.bf16 %v518, %v518
        %v557 = vpack.c.bf16 %v523, %v523
        %v558 = vpack.c.bf16 %v526, %v526
        %v559 = vpack.c.bf16 %v531, %v531
        %v560 = vpack.c.bf16 %v534, %v534
        %v569 = vlaneseq
        %v570 = vshrl.u32 %v569, 7
        %v571 = vsub.s32 0, %v570
        %v572 = vrot.slane %v410, %v571
        %v573 = vlaneseq
        %v574 = vshrl.u32 %v573, 7
        %v575 = vsub.s32 0, %v574
        %v576 = vrot.slane %v411, %v575
        %v577 = vlaneseq
        %v578 = vshrl.u32 %v577, 7
        %v579 = vsub.s32 0, %v578
        %v580 = vrot.slane %v412, %v579
        %v581 = vlaneseq
        %v582 = vshrl.u32 %v581, 7
        %v583 = vsub.s32 0, %v582
        %v584 = vrot.slane %v413, %v583
        %v585 = vlaneseq
        %v586 = vshrl.u32 %v585, 7
        %v587 = vsub.s32 0, %v586
        %v588 = vrot.slane %v414, %v587
        %v589 = vlaneseq
        %v590 = vshrl.u32 %v589, 7
        %v591 = vsub.s32 0, %v590
        %v592 = vrot.slane %v415, %v591
        %v593 = vlaneseq
        %v594 = vshrl.u32 %v593, 7
        %v595 = vsub.s32 0, %v594
        %v596 = vrot.slane %v416, %v595
        %v597 = vlaneseq
        %v598 = vshrl.u32 %v597, 7
        %v599 = vsub.s32 0, %v598
        %v600 = vrot.slane %v417, %v599
        %610 = vrot.lane.b32.xlu0 %v553, 96
        %v611 = vpop.permute.xlu0 %610
        %v613 = vsel %vm459, %v545, 0
        %v616 = vsel %vm459, %v611, 0
        %618 = vmatprep.subr.bf16.mxu0 0
        %619 = vmatpush1.bf16.xpose.msra.mxu0 %v616
        %620 = vmatprep.subr.bf16.mxu0 0
        %621 = vmatpush1.bf16.xpose.msra.mxu0 0
        %622 = vmatprep.subr.bf16.mxu0 0
        %623 = vmatpush1.bf16.xpose.msra.mxu0 0
        %624 = vmatprep.subr.bf16.mxu0 0
        %625 = vmatpush1.bf16.xpose.msra.mxu0 0
        %626 = vmatprep.subr.bf16.mxu0 0
        %627 = vmatpush1.bf16.xpose.msra.mxu0 0
        %628 = vmatprep.subr.bf16.mxu0 0
        %629 = vmatpush1.bf16.xpose.msra.mxu0 0
        %630 = vmatprep.subr.bf16.mxu0 0
        %631 = vmatpush1.bf16.xpose.msra.mxu0 0
        %632 = vmatprep.subr.bf16.mxu0 0
        %633 = vmatpush1.bf16.xpose.msra.mxu0 0
        %634 = vmatprep.subr.bf16.mxu0 0
        %635 = vmatpush1.bf16.xpose.msra.mxu0 0
        %636 = vmatprep.subr.bf16.mxu0 0
        %637 = vmatpush1.bf16.xpose.msra.mxu0 0
        %638 = vmatprep.subr.bf16.mxu0 0
        %639 = vmatpush1.bf16.xpose.msra.mxu0 0
        %640 = vmatprep.subr.bf16.mxu0 0
        %641 = vmatpush1.bf16.xpose.msra.mxu0 0
        %642 = vmatprep.subr.bf16.mxu0 0
        %643 = vmatpush1.bf16.xpose.msra.mxu0 0
        %644 = vmatprep.subr.bf16.mxu0 0
        %645 = vmatpush1.bf16.xpose.msra.mxu0 0
        %646 = vmatprep.subr.bf16.mxu0 0
        %647 = vmatpush1.bf16.xpose.msra.mxu0 0
        %648 = vmatprep.subr.bf16.mxu0 0
        %649 = vmatpush1.bf16.xpose.msra.mxu0 0
        %650 = vmatprep.mubr.bf16.mxu0 0
        %651 = vmatmul.mubr.bf16.gmra.mrb[0].mxu0 %v613
        %v652 = vpop.f32.mrb[0].mxu0
        %v653 = vadd.f32 %v572, %v652
        %v654 = vpop.f32.mrb[0].mxu0
        %v655 = vpop.f32.mrb[0].mxu0
        %v656 = vpop.f32.mrb[0].mxu0
        %657 = vdwg.mxu0
        %659 = vrot.lane.b32.xlu0 %v554, 96
        %v660 = vpop.permute.xlu0 %659
        %v662 = vsel %vm459, %v546, 0
        %v665 = vsel %vm459, %v660, 0
        %667 = vmatprep.subr.bf16.mxu0 0
        %668 = vmatpush1.bf16.xpose.msra.mxu0 %v665
        %669 = vmatprep.subr.bf16.mxu0 0
        %670 = vmatpush1.bf16.xpose.msra.mxu0 0
        %671 = vmatprep.subr.bf16.mxu0 0
        %672 = vmatpush1.bf16.xpose.msra.mxu0 0
        %673 = vmatprep.subr.bf16.mxu0 0
        %674 = vmatpush1.bf16.xpose.msra.mxu0 0
        %675 = vmatprep.subr.bf16.mxu0 0
        %676 = vmatpush1.bf16.xpose.msra.mxu0 0
        %677 = vmatprep.subr.bf16.mxu0 0
        %678 = vmatpush1.bf16.xpose.msra.mxu0 0
        %679 = vmatprep.subr.bf16.mxu0 0
        %680 = vmatpush1.bf16.xpose.msra.mxu0 0
        %681 = vmatprep.subr.bf16.mxu0 0
        %682 = vmatpush1.bf16.xpose.msra.mxu0 0
        %683 = vmatprep.subr.bf16.mxu0 0
        %684 = vmatpush1.bf16.xpose.msra.mxu0 0
        %685 = vmatprep.subr.bf16.mxu0 0
        %686 = vmatpush1.bf16.xpose.msra.mxu0 0
        %687 = vmatprep.subr.bf16.mxu0 0
        %688 = vmatpush1.bf16.xpose.msra.mxu0 0
        %689 = vmatprep.subr.bf16.mxu0 0
        %690 = vmatpush1.bf16.xpose.msra.mxu0 0
        %691 = vmatprep.subr.bf16.mxu0 0
        %692 = vmatpush1.bf16.xpose.msra.mxu0 0
        %693 = vmatprep.subr.bf16.mxu0 0
        %694 = vmatpush1.bf16.xpose.msra.mxu0 0
        %695 = vmatprep.subr.bf16.mxu0 0
        %696 = vmatpush1.bf16.xpose.msra.mxu0 0
        %697 = vmatprep.subr.bf16.mxu0 0
        %698 = vmatpush1.bf16.xpose.msra.mxu0 0
        %699 = vmatprep.mubr.bf16.mxu0 0
        %700 = vmatmul.mubr.bf16.gmra.mrb[0].mxu0 %v662
        %v701 = vpop.f32.mrb[0].mxu0
        %v702 = vadd.f32 %v576, %v701
        %v703 = vpop.f32.mrb[0].mxu0
        %v704 = vpop.f32.mrb[0].mxu0
        %v705 = vpop.f32.mrb[0].mxu0
        %706 = vdwg.mxu0
        %708 = vrot.lane.b32.xlu0 %v555, 96
        %v709 = vpop.permute.xlu0 %708
        %v711 = vsel %vm459, %v547, 0
        %v714 = vsel %vm459, %v709, 0
        %716 = vmatprep.subr.bf16.mxu0 0
        %717 = vmatpush1.bf16.xpose.msra.mxu0 %v714
        %718 = vmatprep.subr.bf16.mxu0 0
        %719 = vmatpush1.bf16.xpose.msra.mxu0 0
        %720 = vmatprep.subr.bf16.mxu0 0
        %721 = vmatpush1.bf16.xpose.msra.mxu0 0
        %722 = vmatprep.subr.bf16.mxu0 0
        %723 = vmatpush1.bf16.xpose.msra.mxu0 0
        %724 = vmatprep.subr.bf16.mxu0 0
        %725 = vmatpush1.bf16.xpose.msra.mxu0 0
        %726 = vmatprep.subr.bf16.mxu0 0
        %727 = vmatpush1.bf16.xpose.msra.mxu0 0
        %728 = vmatprep.subr.bf16.mxu0 0
        %729 = vmatpush1.bf16.xpose.msra.mxu0 0
        %730 = vmatprep.subr.bf16.mxu0 0
        %731 = vmatpush1.bf16.xpose.msra.mxu0 0
        %732 = vmatprep.subr.bf16.mxu0 0
        %733 = vmatpush1.bf16.xpose.msra.mxu0 0
        %734 = vmatprep.subr.bf16.mxu0 0
        %735 = vmatpush1.bf16.xpose.msra.mxu0 0
        %736 = vmatprep.subr.bf16.mxu0 0
        %737 = vmatpush1.bf16.xpose.msra.mxu0 0
        %738 = vmatprep.subr.bf16.mxu0 0
        %739 = vmatpush1.bf16.xpose.msra.mxu0 0
        %740 = vmatprep.subr.bf16.mxu0 0
        %741 = vmatpush1.bf16.xpose.msra.mxu0 0
        %742 = vmatprep.subr.bf16.mxu0 0
        %743 = vmatpush1.bf16.xpose.msra.mxu0 0
        %744 = vmatprep.subr.bf16.mxu0 0
        %745 = vmatpush1.bf16.xpose.msra.mxu0 0
        %746 = vmatprep.subr.bf16.mxu0 0
        %747 = vmatpush1.bf16.xpose.msra.mxu0 0
        %748 = vmatprep.mubr.bf16.mxu0 0
        %749 = vmatmul.mubr.bf16.gmra.mrb[0].mxu0 %v711
        %v750 = vpop.f32.mrb[0].mxu0
        %v751 = vadd.f32 %v580, %v750
        %v752 = vpop.f32.mrb[0].mxu0
        %v753 = vpop.f32.mrb[0].mxu0
        %v754 = vpop.f32.mrb[0].mxu0
        %755 = vdwg.mxu0
        %757 = vrot.lane.b32.xlu0 %v556, 96
        %v758 = vpop.permute.xlu0 %757
        %v760 = vsel %vm459, %v548, 0
        %v763 = vsel %vm459, %v758, 0
        %765 = vmatprep.subr.bf16.mxu0 0
        %766 = vmatpush1.bf16.xpose.msra.mxu0 %v763
        %767 = vmatprep.subr.bf16.mxu0 0
        %768 = vmatpush1.bf16.xpose.msra.mxu0 0
        %769 = vmatprep.subr.bf16.mxu0 0
        %770 = vmatpush1.bf16.xpose.msra.mxu0 0
        %771 = vmatprep.subr.bf16.mxu0 0
        %772 = vmatpush1.bf16.xpose.msra.mxu0 0
        %773 = vmatprep.subr.bf16.mxu0 0
        %774 = vmatpush1.bf16.xpose.msra.mxu0 0
        %775 = vmatprep.subr.bf16.mxu0 0
        %776 = vmatpush1.bf16.xpose.msra.mxu0 0
        %777 = vmatprep.subr.bf16.mxu0 0
        %778 = vmatpush1.bf16.xpose.msra.mxu0 0
        %779 = vmatprep.subr.bf16.mxu0 0
        %780 = vmatpush1.bf16.xpose.msra.mxu0 0
        %781 = vmatprep.subr.bf16.mxu0 0
        %782 = vmatpush1.bf16.xpose.msra.mxu0 0
        %783 = vmatprep.subr.bf16.mxu0 0
        %784 = vmatpush1.bf16.xpose.msra.mxu0 0
        %785 = vmatprep.subr.bf16.mxu0 0
        %786 = vmatpush1.bf16.xpose.msra.mxu0 0
        %787 = vmatprep.subr.bf16.mxu0 0
        %788 = vmatpush1.bf16.xpose.msra.mxu0 0
        %789 = vmatprep.subr.bf16.mxu0 0
        %790 = vmatpush1.bf16.xpose.msra.mxu0 0
        %791 = vmatprep.subr.bf16.mxu0 0
        %792 = vmatpush1.bf16.xpose.msra.mxu0 0
        %793 = vmatprep.subr.bf16.mxu0 0
        %794 = vmatpush1.bf16.xpose.msra.mxu0 0
        %795 = vmatprep.subr.bf16.mxu0 0
        %796 = vmatpush1.bf16.xpose.msra.mxu0 0
        %797 = vmatprep.mubr.bf16.mxu0 0
        %798 = vmatmul.mubr.bf16.gmra.mrb[0].mxu0 %v760
        %v799 = vpop.f32.mrb[0].mxu0
        %v800 = vadd.f32 %v584, %v799
        %v801 = vpop.f32.mrb[0].mxu0
        %v802 = vpop.f32.mrb[0].mxu0
        %v803 = vpop.f32.mrb[0].mxu0
        %804 = vdwg.mxu0
        %806 = vrot.lane.b32.xlu0 %v557, 96
        %v807 = vpop.permute.xlu0 %806
        %v809 = vsel %vm459, %v549, 0
        %v812 = vsel %vm459, %v807, 0
        %814 = vmatprep.subr.bf16.mxu0 0
        %815 = vmatpush1.bf16.xpose.msra.mxu0 %v812
        %816 = vmatprep.subr.bf16.mxu0 0
        %817 = vmatpush1.bf16.xpose.msra.mxu0 0
        %818 = vmatprep.subr.bf16.mxu0 0
        %819 = vmatpush1.bf16.xpose.msra.mxu0 0
        %820 = vmatprep.subr.bf16.mxu0 0
        %821 = vmatpush1.bf16.xpose.msra.mxu0 0
        %822 = vmatprep.subr.bf16.mxu0 0
        %823 = vmatpush1.bf16.xpose.msra.mxu0 0
        %824 = vmatprep.subr.bf16.mxu0 0
        %825 = vmatpush1.bf16.xpose.msra.mxu0 0
        %826 = vmatprep.subr.bf16.mxu0 0
        %827 = vmatpush1.bf16.xpose.msra.mxu0 0
        %828 = vmatprep.subr.bf16.mxu0 0
        %829 = vmatpush1.bf16.xpose.msra.mxu0 0
        %830 = vmatprep.subr.bf16.mxu0 0
        %831 = vmatpush1.bf16.xpose.msra.mxu0 0
        %832 = vmatprep.subr.bf16.mxu0 0
        %833 = vmatpush1.bf16.xpose.msra.mxu0 0
        %834 = vmatprep.subr.bf16.mxu0 0
        %835 = vmatpush1.bf16.xpose.msra.mxu0 0
        %836 = vmatprep.subr.bf16.mxu0 0
        %837 = vmatpush1.bf16.xpose.msra.mxu0 0
        %838 = vmatprep.subr.bf16.mxu0 0
        %839 = vmatpush1.bf16.xpose.msra.mxu0 0
        %840 = vmatprep.subr.bf16.mxu0 0
        %841 = vmatpush1.bf16.xpose.msra.mxu0 0
        %842 = vmatprep.subr.bf16.mxu0 0
        %843 = vmatpush1.bf16.xpose.msra.mxu0 0
        %844 = vmatprep.subr.bf16.mxu0 0
        %845 = vmatpush1.bf16.xpose.msra.mxu0 0
        %846 = vmatprep.mubr.bf16.mxu0 0
        %847 = vmatmul.mubr.bf16.gmra.mrb[0].mxu0 %v809
        %v848 = vpop.f32.mrb[0].mxu0
        %v849 = vadd.f32 %v588, %v848
        %v850 = vpop.f32.mrb[0].mxu0
        %v851 = vpop.f32.mrb[0].mxu0
        %v852 = vpop.f32.mrb[0].mxu0
        %853 = vdwg.mxu0
        %855 = vrot.lane.b32.xlu0 %v558, 96
        %v856 = vpop.permute.xlu0 %855
        %v858 = vsel %vm459, %v550, 0
        %v861 = vsel %vm459, %v856, 0
        %863 = vmatprep.subr.bf16.mxu0 0
        %864 = vmatpush1.bf16.xpose.msra.mxu0 %v861
        %865 = vmatprep.subr.bf16.mxu0 0
        %866 = vmatpush1.bf16.xpose.msra.mxu0 0
        %867 = vmatprep.subr.bf16.mxu0 0
        %868 = vmatpush1.bf16.xpose.msra.mxu0 0
        %869 = vmatprep.subr.bf16.mxu0 0
        %870 = vmatpush1.bf16.xpose.msra.mxu0 0
        %871 = vmatprep.subr.bf16.mxu0 0
        %872 = vmatpush1.bf16.xpose.msra.mxu0 0
        %873 = vmatprep.subr.bf16.mxu0 0
        %874 = vmatpush1.bf16.xpose.msra.mxu0 0
        %875 = vmatprep.subr.bf16.mxu0 0
        %876 = vmatpush1.bf16.xpose.msra.mxu0 0
        %877 = vmatprep.subr.bf16.mxu0 0
        %878 = vmatpush1.bf16.xpose.msra.mxu0 0
        %879 = vmatprep.subr.bf16.mxu0 0
        %880 = vmatpush1.bf16.xpose.msra.mxu0 0
        %881 = vmatprep.subr.bf16.mxu0 0
        %882 = vmatpush1.bf16.xpose.msra.mxu0 0
        %883 = vmatprep.subr.bf16.mxu0 0
        %884 = vmatpush1.bf16.xpose.msra.mxu0 0
        %885 = vmatprep.subr.bf16.mxu0 0
        %886 = vmatpush1.bf16.xpose.msra.mxu0 0
        %887 = vmatprep.subr.bf16.mxu0 0
        %888 = vmatpush1.bf16.xpose.msra.mxu0 0
        %889 = vmatprep.subr.bf16.mxu0 0
        %890 = vmatpush1.bf16.xpose.msra.mxu0 0
        %891 = vmatprep.subr.bf16.mxu0 0
        %892 = vmatpush1.bf16.xpose.msra.mxu0 0
        %893 = vmatprep.subr.bf16.mxu0 0
        %894 = vmatpush1.bf16.xpose.msra.mxu0 0
        %895 = vmatprep.mubr.bf16.mxu0 0
        %896 = vmatmul.mubr.bf16.gmra.mrb[0].mxu0 %v858
        %v897 = vpop.f32.mrb[0].mxu0
        %v898 = vadd.f32 %v592, %v897
        %v899 = vpop.f32.mrb[0].mxu0
        %v900 = vpop.f32.mrb[0].mxu0
        %v901 = vpop.f32.mrb[0].mxu0
        %902 = vdwg.mxu0
        %904 = vrot.lane.b32.xlu0 %v559, 96
        %v905 = vpop.permute.xlu0 %904
        %v907 = vsel %vm459, %v551, 0
        %v910 = vsel %vm459, %v905, 0
        %912 = vmatprep.subr.bf16.mxu0 0
        %913 = vmatpush1.bf16.xpose.msra.mxu0 %v910
        %914 = vmatprep.subr.bf16.mxu0 0
        %915 = vmatpush1.bf16.xpose.msra.mxu0 0
        %916 = vmatprep.subr.bf16.mxu0 0
        %917 = vmatpush1.bf16.xpose.msra.mxu0 0
        %918 = vmatprep.subr.bf16.mxu0 0
        %919 = vmatpush1.bf16.xpose.msra.mxu0 0
        %920 = vmatprep.subr.bf16.mxu0 0
        %921 = vmatpush1.bf16.xpose.msra.mxu0 0
        %922 = vmatprep.subr.bf16.mxu0 0
        %923 = vmatpush1.bf16.xpose.msra.mxu0 0
        %924 = vmatprep.subr.bf16.mxu0 0
        %925 = vmatpush1.bf16.xpose.msra.mxu0 0
        %926 = vmatprep.subr.bf16.mxu0 0
        %927 = vmatpush1.bf16.xpose.msra.mxu0 0
        %928 = vmatprep.subr.bf16.mxu0 0
        %929 = vmatpush1.bf16.xpose.msra.mxu0 0
        %930 = vmatprep.subr.bf16.mxu0 0
        %931 = vmatpush1.bf16.xpose.msra.mxu0 0
        %932 = vmatprep.subr.bf16.mxu0 0
        %933 = vmatpush1.bf16.xpose.msra.mxu0 0
        %934 = vmatprep.subr.bf16.mxu0 0
        %935 = vmatpush1.bf16.xpose.msra.mxu0 0
        %936 = vmatprep.subr.bf16.mxu0 0
        %937 = vmatpush1.bf16.xpose.msra.mxu0 0
        %938 = vmatprep.subr.bf16.mxu0 0
        %939 = vmatpush1.bf16.xpose.msra.mxu0 0
        %940 = vmatprep.subr.bf16.mxu0 0
        %941 = vmatpush1.bf16.xpose.msra.mxu0 0
        %942 = vmatprep.subr.bf16.mxu0 0
        %943 = vmatpush1.bf16.xpose.msra.mxu0 0
        %944 = vmatprep.mubr.bf16.mxu0 0
        %945 = vmatmul.mubr.bf16.gmra.mrb[0].mxu0 %v907
        %v946 = vpop.f32.mrb[0].mxu0
        %v947 = vadd.f32 %v596, %v946
        %v948 = vpop.f32.mrb[0].mxu0
        %v949 = vpop.f32.mrb[0].mxu0
        %v950 = vpop.f32.mrb[0].mxu0
        %951 = vdwg.mxu0
        %953 = vrot.lane.b32.xlu0 %v560, 96
        %v954 = vpop.permute.xlu0 %953
        %v956 = vsel %vm459, %v552, 0
        %v959 = vsel %vm459, %v954, 0
        %961 = vmatprep.subr.bf16.mxu0 0
        %962 = vmatpush1.bf16.xpose.msra.mxu0 %v959
        %963 = vmatprep.subr.bf16.mxu0 0
        %964 = vmatpush1.bf16.xpose.msra.mxu0 0
        %965 = vmatprep.subr.bf16.mxu0 0
        %966 = vmatpush1.bf16.xpose.msra.mxu0 0
        %967 = vmatprep.subr.bf16.mxu0 0
        %968 = vmatpush1.bf16.xpose.msra.mxu0 0
        %969 = vmatprep.subr.bf16.mxu0 0
        %970 = vmatpush1.bf16.xpose.msra.mxu0 0
        %971 = vmatprep.subr.bf16.mxu0 0
        %972 = vmatpush1.bf16.xpose.msra.mxu0 0
        %973 = vmatprep.subr.bf16.mxu0 0
        %974 = vmatpush1.bf16.xpose.msra.mxu0 0
        %975 = vmatprep.subr.bf16.mxu0 0
        %976 = vmatpush1.bf16.xpose.msra.mxu0 0
        %977 = vmatprep.subr.bf16.mxu0 0
        %978 = vmatpush1.bf16.xpose.msra.mxu0 0
        %979 = vmatprep.subr.bf16.mxu0 0
        %980 = vmatpush1.bf16.xpose.msra.mxu0 0
        %981 = vmatprep.subr.bf16.mxu0 0
        %982 = vmatpush1.bf16.xpose.msra.mxu0 0
        %983 = vmatprep.subr.bf16.mxu0 0
        %984 = vmatpush1.bf16.xpose.msra.mxu0 0
        %985 = vmatprep.subr.bf16.mxu0 0
        %986 = vmatpush1.bf16.xpose.msra.mxu0 0
        %987 = vmatprep.subr.bf16.mxu0 0
        %988 = vmatpush1.bf16.xpose.msra.mxu0 0
        %989 = vmatprep.subr.bf16.mxu0 0
        %990 = vmatpush1.bf16.xpose.msra.mxu0 0
        %991 = vmatprep.subr.bf16.mxu0 0
        %992 = vmatpush1.bf16.xpose.msra.mxu0 0
        %993 = vmatprep.mubr.bf16.mxu0 0
        %994 = vmatmul.mubr.bf16.gmra.mrb[0].mxu0 %v956
        %v995 = vpop.f32.mrb[0].mxu0
        %v996 = vadd.f32 %v600, %v995
        %v997 = vpop.f32.mrb[0].mxu0
        %v998 = vpop.f32.mrb[0].mxu0
        %v999 = vpop.f32.mrb[0].mxu0
        %1000 = vdwg.mxu0
        %vm1001 = vcmask 64512
        %v1002 = vsel %vm1001, %v653, -inf
        %1003 = vmax.xlane.f32.xlu0 %v1002
        %v1004 = vpop.xlane.xlu0 %1003
        %v1005 = vsel %vm1001, %v702, -inf
        %1006 = vmax.xlane.f32.xlu0 %v1005
        %v1007 = vpop.xlane.xlu0 %1006
        %v1008 = vsel %vm1001, %v751, -inf
        %1009 = vmax.xlane.f32.xlu0 %v1008
        %v1010 = vpop.xlane.xlu0 %1009
        %v1011 = vsel %vm1001, %v800, -inf
        %1012 = vmax.xlane.f32.xlu0 %v1011
        %v1013 = vpop.xlane.xlu0 %1012
        %v1014 = vsel %vm1001, %v849, -inf
        %1015 = vmax.xlane.f32.xlu0 %v1014
        %v1016 = vpop.xlane.xlu0 %1015
        %v1017 = vsel %vm1001, %v898, -inf
        %1018 = vmax.xlane.f32.xlu0 %v1017
        %v1019 = vpop.xlane.xlu0 %1018
        %v1020 = vsel %vm1001, %v947, -inf
        %1021 = vmax.xlane.f32.xlu0 %v1020
        %v1022 = vpop.xlane.xlu0 %1021
        %v1023 = vsel %vm1001, %v996, -inf
        %1024 = vmax.xlane.f32.xlu0 %v1023
        %v1025 = vpop.xlane.xlu0 %1024
        %v1026 = vsub.f32 %v653, %v1004
        %v1027 = vsub.f32 %v702, %v1007
        %v1028 = vsub.f32 %v751, %v1010
        %v1029 = vsub.f32 %v800, %v1013
        %v1030 = vsub.f32 %v849, %v1016
        %v1031 = vsub.f32 %v898, %v1019
        %v1032 = vsub.f32 %v947, %v1022
        %v1033 = vsub.f32 %v996, %v1025
        %v1034 = vmul.f32 %v1026, 1.442695
        %v1035 = vpow.pop %v1034
        %v1036 = vmul.f32 %v1027, 1.442695
        %v1037 = vpow.pop %v1036
        %v1038 = vmul.f32 %v1028, 1.442695
        %v1039 = vpow.pop %v1038
        %v1040 = vmul.f32 %v1029, 1.442695
        %v1041 = vpow.pop %v1040
        %v1042 = vmul.f32 %v1030, 1.442695
        %v1043 = vpow.pop %v1042
        %v1044 = vmul.f32 %v1031, 1.442695
        %v1045 = vpow.pop %v1044
        %v1046 = vmul.f32 %v1032, 1.442695
        %v1047 = vpow.pop %v1046
        %v1048 = vmul.f32 %v1033, 1.442695
        %v1049 = vpow.pop %v1048
        %v1050 = vsel %vm1001, %v1035, 0.0
        %1051 = vadd.xlane.f32.xlu0 %v1050
        %v1052 = vpop.xlane.xlu0 %1051
        %v1053 = vsel %vm1001, %v1037, 0.0
        %1054 = vadd.xlane.f32.xlu0 %v1053
        %v1055 = vpop.xlane.xlu0 %1054
        %v1056 = vsel %vm1001, %v1039, 0.0
        %1057 = vadd.xlane.f32.xlu0 %v1056
        %v1058 = vpop.xlane.xlu0 %1057
        %v1059 = vsel %vm1001, %v1041, 0.0
        %1060 = vadd.xlane.f32.xlu0 %v1059
        %v1061 = vpop.xlane.xlu0 %1060
        %v1062 = vsel %vm1001, %v1043, 0.0
        %1063 = vadd.xlane.f32.xlu0 %v1062
        %v1064 = vpop.xlane.xlu0 %1063
        %v1065 = vsel %vm1001, %v1045, 0.0
        %1066 = vadd.xlane.f32.xlu0 %v1065
        %v1067 = vpop.xlane.xlu0 %1066
        %v1068 = vsel %vm1001, %v1047, 0.0
        %1069 = vadd.xlane.f32.xlu0 %v1068
        %v1070 = vpop.xlane.xlu0 %1069
        %v1071 = vsel %vm1001, %v1049, 0.0
        %1072 = vadd.xlane.f32.xlu0 %v1071
        %v1073 = vpop.xlane.xlu0 %1072
        %v1074 = vrcp.pop %v1052
        %v1075 = vrcp.pop %v1055
        %v1076 = vrcp.pop %v1058
        %v1077 = vrcp.pop %v1061
        %v1078 = vrcp.pop %v1064
        %v1079 = vrcp.pop %v1067
        %v1080 = vrcp.pop %v1070
        %v1081 = vrcp.pop %v1073
        %v1082 = vmul.f32 %v1035, %v1074
        %v1083 = vmul.f32 %v1037, %v1075
        %v1084 = vmul.f32 %v1039, %v1076
        %v1085 = vmul.f32 %v1041, %v1077
        %v1086 = vmul.f32 %v1043, %v1078
        %v1087 = vmul.f32 %v1045, %v1079
        %v1088 = vmul.f32 %v1047, %v1080
        %v1089 = vmul.f32 %v1049, %v1081
        %v1090 = vpack.c.bf16 %v1082, %v1082
        %v1091 = vpack.c.bf16 %v1083, %v1083
        %v1092 = vpack.c.bf16 %v1084, %v1084
        %v1093 = vpack.c.bf16 %v1085, %v1085
        %v1094 = vpack.c.bf16 %v1086, %v1086
        %v1095 = vpack.c.bf16 %v1087, %v1087
        %v1096 = vpack.c.bf16 %v1088, %v1088
        %v1097 = vpack.c.bf16 %v1089, %v1089
        %1098 = vrot.lane.b32.xlu0 %v553, 64
        %v1099 = vpop.permute.xlu0 %1098
        %v1101 = vsel %vm1001, %v1090, 0
        %vm1103 = vcmask 1043456
        %v1105 = vsel %vm1103, %v1099, 0
        %1107 = vmatprep.subr.bf16.mxu0 0
        %1108 = vmatpush1.bf16.msra.mxu0 %v1105
        %1109 = vmatprep.subr.bf16.mxu0 0
        %1110 = vmatpush1.bf16.msra.mxu0 0
        %1111 = vmatprep.subr.bf16.mxu0 0
        %1112 = vmatpush1.bf16.msra.mxu0 0
        %1113 = vmatprep.subr.bf16.mxu0 0
        %1114 = vmatpush1.bf16.msra.mxu0 0
        %1115 = vmatprep.subr.bf16.mxu0 0
        %1116 = vmatpush1.bf16.msra.mxu0 0
        %1117 = vmatprep.subr.bf16.mxu0 0
        %1118 = vmatpush1.bf16.msra.mxu0 0
        %1119 = vmatprep.subr.bf16.mxu0 0
        %1120 = vmatpush1.bf16.msra.mxu0 0
        %1121 = vmatprep.subr.bf16.mxu0 0
        %1122 = vmatpush1.bf16.msra.mxu0 0
        %1123 = vmatprep.subr.bf16.mxu0 0
        %1124 = vmatpush1.bf16.msra.mxu0 0
        %1125 = vmatprep.subr.bf16.mxu0 0
        %1126 = vmatpush1.bf16.msra.mxu0 0
        %1127 = vmatprep.subr.bf16.mxu0 0
        %1128 = vmatpush1.bf16.msra.mxu0 0
        %1129 = vmatprep.subr.bf16.mxu0 0
        %1130 = vmatpush1.bf16.msra.mxu0 0
        %1131 = vmatprep.subr.bf16.mxu0 0
        %1132 = vmatpush1.bf16.msra.mxu0 0
        %1133 = vmatprep.subr.bf16.mxu0 0
        %1134 = vmatpush1.bf16.msra.mxu0 0
        %1135 = vmatprep.subr.bf16.mxu0 0
        %1136 = vmatpush1.bf16.msra.mxu0 0
        %1137 = vmatprep.subr.bf16.mxu0 0
        %1138 = vmatpush1.bf16.msra.mxu0 0
        %1139 = vmatprep.mubr.bf16.mxu0 0
        %1140 = vmatmul.mubr.bf16.gmra.mrb[0].mxu0 %v1101
        %v1141 = vpop.f32.mrb[0].mxu0
        %v1142 = vadd.f32 0.0, %v1141
        %v1143 = vpop.f32.mrb[0].mxu0
        %v1144 = vpop.f32.mrb[0].mxu0
        %v1145 = vpop.f32.mrb[0].mxu0
        %1146 = vdwg.mxu0
        %1147 = vrot.lane.b32.xlu0 %v554, 64
        %v1148 = vpop.permute.xlu0 %1147
        %v1150 = vsel %vm1001, %v1091, 0
        %v1153 = vsel %vm1103, %v1148, 0
        %1155 = vmatprep.subr.bf16.mxu0 0
        %1156 = vmatpush1.bf16.msra.mxu0 %v1153
        %1157 = vmatprep.subr.bf16.mxu0 0
        %1158 = vmatpush1.bf16.msra.mxu0 0
        %1159 = vmatprep.subr.bf16.mxu0 0
        %1160 = vmatpush1.bf16.msra.mxu0 0
        %1161 = vmatprep.subr.bf16.mxu0 0
        %1162 = vmatpush1.bf16.msra.mxu0 0
        %1163 = vmatprep.subr.bf16.mxu0 0
        %1164 = vmatpush1.bf16.msra.mxu0 0
        %1165 = vmatprep.subr.bf16.mxu0 0
        %1166 = vmatpush1.bf16.msra.mxu0 0
        %1167 = vmatprep.subr.bf16.mxu0 0
        %1168 = vmatpush1.bf16.msra.mxu0 0
        %1169 = vmatprep.subr.bf16.mxu0 0
        %1170 = vmatpush1.bf16.msra.mxu0 0
        %1171 = vmatprep.subr.bf16.mxu0 0
        %1172 = vmatpush1.bf16.msra.mxu0 0
        %1173 = vmatprep.subr.bf16.mxu0 0
        %1174 = vmatpush1.bf16.msra.mxu0 0
        %1175 = vmatprep.subr.bf16.mxu0 0
        %1176 = vmatpush1.bf16.msra.mxu0 0
        %1177 = vmatprep.subr.bf16.mxu0 0
        %1178 = vmatpush1.bf16.msra.mxu0 0
        %1179 = vmatprep.subr.bf16.mxu0 0
        %1180 = vmatpush1.bf16.msra.mxu0 0
        %1181 = vmatprep.subr.bf16.mxu0 0
        %1182 = vmatpush1.bf16.msra.mxu0 0
        %1183 = vmatprep.subr.bf16.mxu0 0
        %1184 = vmatpush1.bf16.msra.mxu0 0
        %1185 = vmatprep.subr.bf16.mxu0 0
        %1186 = vmatpush1.bf16.msra.mxu0 0
        %1187 = vmatprep.mubr.bf16.mxu0 0
        %1188 = vmatmul.mubr.bf16.gmra.mrb[0].mxu0 %v1150
        %v1189 = vpop.f32.mrb[0].mxu0
        %v1190 = vadd.f32 0.0, %v1189
        %v1191 = vpop.f32.mrb[0].mxu0
        %v1192 = vpop.f32.mrb[0].mxu0
        %v1193 = vpop.f32.mrb[0].mxu0
        %1194 = vdwg.mxu0
        %1195 = vrot.lane.b32.xlu0 %v555, 64
        %v1196 = vpop.permute.xlu0 %1195
        %v1198 = vsel %vm1001, %v1092, 0
        %v1201 = vsel %vm1103, %v1196, 0
        %1203 = vmatprep.subr.bf16.mxu0 0
        %1204 = vmatpush1.bf16.msra.mxu0 %v1201
        %1205 = vmatprep.subr.bf16.mxu0 0
        %1206 = vmatpush1.bf16.msra.mxu0 0
        %1207 = vmatprep.subr.bf16.mxu0 0
        %1208 = vmatpush1.bf16.msra.mxu0 0
        %1209 = vmatprep.subr.bf16.mxu0 0
        %1210 = vmatpush1.bf16.msra.mxu0 0
        %1211 = vmatprep.subr.bf16.mxu0 0
        %1212 = vmatpush1.bf16.msra.mxu0 0
        %1213 = vmatprep.subr.bf16.mxu0 0
        %1214 = vmatpush1.bf16.msra.mxu0 0
        %1215 = vmatprep.subr.bf16.mxu0 0
        %1216 = vmatpush1.bf16.msra.mxu0 0
        %1217 = vmatprep.subr.bf16.mxu0 0
        %1218 = vmatpush1.bf16.msra.mxu0 0
        %1219 = vmatprep.subr.bf16.mxu0 0
        %1220 = vmatpush1.bf16.msra.mxu0 0
        %1221 = vmatprep.subr.bf16.mxu0 0
        %1222 = vmatpush1.bf16.msra.mxu0 0
        %1223 = vmatprep.subr.bf16.mxu0 0
        %1224 = vmatpush1.bf16.msra.mxu0 0
        %1225 = vmatprep.subr.bf16.mxu0 0
        %1226 = vmatpush1.bf16.msra.mxu0 0
        %1227 = vmatprep.subr.bf16.mxu0 0
        %1228 = vmatpush1.bf16.msra.mxu0 0
        %1229 = vmatprep.subr.bf16.mxu0 0
        %1230 = vmatpush1.bf16.msra.mxu0 0
        %1231 = vmatprep.subr.bf16.mxu0 0
        %1232 = vmatpush1.bf16.msra.mxu0 0
        %1233 = vmatprep.subr.bf16.mxu0 0
        %1234 = vmatpush1.bf16.msra.mxu0 0
        %1235 = vmatprep.mubr.bf16.mxu0 0
        %1236 = vmatmul.mubr.bf16.gmra.mrb[0].mxu0 %v1198
        %v1237 = vpop.f32.mrb[0].mxu0
        %v1238 = vadd.f32 0.0, %v1237
        %v1239 = vpop.f32.mrb[0].mxu0
        %v1240 = vpop.f32.mrb[0].mxu0
        %v1241 = vpop.f32.mrb[0].mxu0
        %1242 = vdwg.mxu0
        %1243 = vrot.lane.b32.xlu0 %v556, 64
        %v1244 = vpop.permute.xlu0 %1243
        %v1246 = vsel %vm1001, %v1093, 0
        %v1249 = vsel %vm1103, %v1244, 0
        %1251 = vmatprep.subr.bf16.mxu0 0
        %1252 = vmatpush1.bf16.msra.mxu0 %v1249
        %1253 = vmatprep.subr.bf16.mxu0 0
        %1254 = vmatpush1.bf16.msra.mxu0 0
        %1255 = vmatprep.subr.bf16.mxu0 0
        %1256 = vmatpush1.bf16.msra.mxu0 0
        %1257 = vmatprep.subr.bf16.mxu0 0
        %1258 = vmatpush1.bf16.msra.mxu0 0
        %1259 = vmatprep.subr.bf16.mxu0 0
        %1260 = vmatpush1.bf16.msra.mxu0 0
        %1261 = vmatprep.subr.bf16.mxu0 0
        %1262 = vmatpush1.bf16.msra.mxu0 0
        %1263 = vmatprep.subr.bf16.mxu0 0
        %1264 = vmatpush1.bf16.msra.mxu0 0
        %1265 = vmatprep.subr.bf16.mxu0 0
        %1266 = vmatpush1.bf16.msra.mxu0 0
        %1267 = vmatprep.subr.bf16.mxu0 0
        %1268 = vmatpush1.bf16.msra.mxu0 0
        %1269 = vmatprep.subr.bf16.mxu0 0
        %1270 = vmatpush1.bf16.msra.mxu0 0
        %1271 = vmatprep.subr.bf16.mxu0 0
        %1272 = vmatpush1.bf16.msra.mxu0 0
        %1273 = vmatprep.subr.bf16.mxu0 0
        %1274 = vmatpush1.bf16.msra.mxu0 0
        %1275 = vmatprep.subr.bf16.mxu0 0
        %1276 = vmatpush1.bf16.msra.mxu0 0
        %1277 = vmatprep.subr.bf16.mxu0 0
        %1278 = vmatpush1.bf16.msra.mxu0 0
        %1279 = vmatprep.subr.bf16.mxu0 0
        %1280 = vmatpush1.bf16.msra.mxu0 0
        %1281 = vmatprep.subr.bf16.mxu0 0
        %1282 = vmatpush1.bf16.msra.mxu0 0
        %1283 = vmatprep.mubr.bf16.mxu0 0
        %1284 = vmatmul.mubr.bf16.gmra.mrb[0].mxu0 %v1246
        %v1285 = vpop.f32.mrb[0].mxu0
        %v1286 = vadd.f32 0.0, %v1285
        %v1287 = vpop.f32.mrb[0].mxu0
        %v1288 = vpop.f32.mrb[0].mxu0
        %v1289 = vpop.f32.mrb[0].mxu0
        %1290 = vdwg.mxu0
        %1291 = vrot.lane.b32.xlu0 %v557, 64
        %v1292 = vpop.permute.xlu0 %1291
        %v1294 = vsel %vm1001, %v1094, 0
        %v1297 = vsel %vm1103, %v1292, 0
        %1299 = vmatprep.subr.bf16.mxu0 0
        %1300 = vmatpush1.bf16.msra.mxu0 %v1297
        %1301 = vmatprep.subr.bf16.mxu0 0
        %1302 = vmatpush1.bf16.msra.mxu0 0
        %1303 = vmatprep.subr.bf16.mxu0 0
        %1304 = vmatpush1.bf16.msra.mxu0 0
        %1305 = vmatprep.subr.bf16.mxu0 0
        %1306 = vmatpush1.bf16.msra.mxu0 0
        %1307 = vmatprep.subr.bf16.mxu0 0
        %1308 = vmatpush1.bf16.msra.mxu0 0
        %1309 = vmatprep.subr.bf16.mxu0 0
        %1310 = vmatpush1.bf16.msra.mxu0 0
        %1311 = vmatprep.subr.bf16.mxu0 0
        %1312 = vmatpush1.bf16.msra.mxu0 0
        %1313 = vmatprep.subr.bf16.mxu0 0
        %1314 = vmatpush1.bf16.msra.mxu0 0
        %1315 = vmatprep.subr.bf16.mxu0 0
        %1316 = vmatpush1.bf16.msra.mxu0 0
        %1317 = vmatprep.subr.bf16.mxu0 0
        %1318 = vmatpush1.bf16.msra.mxu0 0
        %1319 = vmatprep.subr.bf16.mxu0 0
        %1320 = vmatpush1.bf16.msra.mxu0 0
        %1321 = vmatprep.subr.bf16.mxu0 0
        %1322 = vmatpush1.bf16.msra.mxu0 0
        %1323 = vmatprep.subr.bf16.mxu0 0
        %1324 = vmatpush1.bf16.msra.mxu0 0
        %1325 = vmatprep.subr.bf16.mxu0 0
        %1326 = vmatpush1.bf16.msra.mxu0 0
        %1327 = vmatprep.subr.bf16.mxu0 0
        %1328 = vmatpush1.bf16.msra.mxu0 0
        %1329 = vmatprep.subr.bf16.mxu0 0
        %1330 = vmatpush1.bf16.msra.mxu0 0
        %1331 = vmatprep.mubr.bf16.mxu0 0
        %1332 = vmatmul.mubr.bf16.gmra.mrb[0].mxu0 %v1294
        %v1333 = vpop.f32.mrb[0].mxu0
        %v1334 = vadd.f32 0.0, %v1333
        %v1335 = vpop.f32.mrb[0].mxu0
        %v1336 = vpop.f32.mrb[0].mxu0
        %v1337 = vpop.f32.mrb[0].mxu0
        %1338 = vdwg.mxu0
        %1339 = vrot.lane.b32.xlu0 %v558, 64
        %v1340 = vpop.permute.xlu0 %1339
        %v1342 = vsel %vm1001, %v1095, 0
        %v1345 = vsel %vm1103, %v1340, 0
        %1347 = vmatprep.subr.bf16.mxu0 0
        %1348 = vmatpush1.bf16.msra.mxu0 %v1345
        %1349 = vmatprep.subr.bf16.mxu0 0
        %1350 = vmatpush1.bf16.msra.mxu0 0
        %1351 = vmatprep.subr.bf16.mxu0 0
        %1352 = vmatpush1.bf16.msra.mxu0 0
        %1353 = vmatprep.subr.bf16.mxu0 0
        %1354 = vmatpush1.bf16.msra.mxu0 0
        %1355 = vmatprep.subr.bf16.mxu0 0
        %1356 = vmatpush1.bf16.msra.mxu0 0
        %1357 = vmatprep.subr.bf16.mxu0 0
        %1358 = vmatpush1.bf16.msra.mxu0 0
        %1359 = vmatprep.subr.bf16.mxu0 0
        %1360 = vmatpush1.bf16.msra.mxu0 0
        %1361 = vmatprep.subr.bf16.mxu0 0
        %1362 = vmatpush1.bf16.msra.mxu0 0
        %1363 = vmatprep.subr.bf16.mxu0 0
        %1364 = vmatpush1.bf16.msra.mxu0 0
        %1365 = vmatprep.subr.bf16.mxu0 0
        %1366 = vmatpush1.bf16.msra.mxu0 0
        %1367 = vmatprep.subr.bf16.mxu0 0
        %1368 = vmatpush1.bf16.msra.mxu0 0
        %1369 = vmatprep.subr.bf16.mxu0 0
        %1370 = vmatpush1.bf16.msra.mxu0 0
        %1371 = vmatprep.subr.bf16.mxu0 0
        %1372 = vmatpush1.bf16.msra.mxu0 0
        %1373 = vmatprep.subr.bf16.mxu0 0
        %1374 = vmatpush1.bf16.msra.mxu0 0
        %1375 = vmatprep.subr.bf16.mxu0 0
        %1376 = vmatpush1.bf16.msra.mxu0 0
        %1377 = vmatprep.subr.bf16.mxu0 0
        %1378 = vmatpush1.bf16.msra.mxu0 0
        %1379 = vmatprep.mubr.bf16.mxu0 0
        %1380 = vmatmul.mubr.bf16.gmra.mrb[0].mxu0 %v1342
        %v1381 = vpop.f32.mrb[0].mxu0
        %v1382 = vadd.f32 0.0, %v1381
        %v1383 = vpop.f32.mrb[0].mxu0
        %v1384 = vpop.f32.mrb[0].mxu0
        %v1385 = vpop.f32.mrb[0].mxu0
        %1386 = vdwg.mxu0
        %1387 = vrot.lane.b32.xlu0 %v559, 64
        %v1388 = vpop.permute.xlu0 %1387
        %v1390 = vsel %vm1001, %v1096, 0
        %v1393 = vsel %vm1103, %v1388, 0
        %1395 = vmatprep.subr.bf16.mxu0 0
        %1396 = vmatpush1.bf16.msra.mxu0 %v1393
        %1397 = vmatprep.subr.bf16.mxu0 0
        %1398 = vmatpush1.bf16.msra.mxu0 0
        %1399 = vmatprep.subr.bf16.mxu0 0
        %1400 = vmatpush1.bf16.msra.mxu0 0
        %1401 = vmatprep.subr.bf16.mxu0 0
        %1402 = vmatpush1.bf16.msra.mxu0 0
        %1403 = vmatprep.subr.bf16.mxu0 0
        %1404 = vmatpush1.bf16.msra.mxu0 0
        %1405 = vmatprep.subr.bf16.mxu0 0
        %1406 = vmatpush1.bf16.msra.mxu0 0
        %1407 = vmatprep.subr.bf16.mxu0 0
        %1408 = vmatpush1.bf16.msra.mxu0 0
        %1409 = vmatprep.subr.bf16.mxu0 0
        %1410 = vmatpush1.bf16.msra.mxu0 0
        %1411 = vmatprep.subr.bf16.mxu0 0
        %1412 = vmatpush1.bf16.msra.mxu0 0
        %1413 = vmatprep.subr.bf16.mxu0 0
        %1414 = vmatpush1.bf16.msra.mxu0 0
        %1415 = vmatprep.subr.bf16.mxu0 0
        %1416 = vmatpush1.bf16.msra.mxu0 0
        %1417 = vmatprep.subr.bf16.mxu0 0
        %1418 = vmatpush1.bf16.msra.mxu0 0
        %1419 = vmatprep.subr.bf16.mxu0 0
        %1420 = vmatpush1.bf16.msra.mxu0 0
        %1421 = vmatprep.subr.bf16.mxu0 0
        %1422 = vmatpush1.bf16.msra.mxu0 0
        %1423 = vmatprep.subr.bf16.mxu0 0
        %1424 = vmatpush1.bf16.msra.mxu0 0
        %1425 = vmatprep.subr.bf16.mxu0 0
        %1426 = vmatpush1.bf16.msra.mxu0 0
        %1427 = vmatprep.mubr.bf16.mxu0 0
        %1428 = vmatmul.mubr.bf16.gmra.mrb[0].mxu0 %v1390
        %v1429 = vpop.f32.mrb[0].mxu0
        %v1430 = vadd.f32 0.0, %v1429
        %v1431 = vpop.f32.mrb[0].mxu0
        %v1432 = vpop.f32.mrb[0].mxu0
        %v1433 = vpop.f32.mrb[0].mxu0
        %1434 = vdwg.mxu0
        %1435 = vrot.lane.b32.xlu0 %v560, 64
        %v1436 = vpop.permute.xlu0 %1435
        %v1438 = vsel %vm1001, %v1097, 0
        %v1441 = vsel %vm1103, %v1436, 0
        %1443 = vmatprep.subr.bf16.mxu0 0
        %1444 = vmatpush1.bf16.msra.mxu0 %v1441
        %1445 = vmatprep.subr.bf16.mxu0 0
        %1446 = vmatpush1.bf16.msra.mxu0 0
        %1447 = vmatprep.subr.bf16.mxu0 0
        %1448 = vmatpush1.bf16.msra.mxu0 0
        %1449 = vmatprep.subr.bf16.mxu0 0
        %1450 = vmatpush1.bf16.msra.mxu0 0
        %1451 = vmatprep.subr.bf16.mxu0 0
        %1452 = vmatpush1.bf16.msra.mxu0 0
        %1453 = vmatprep.subr.bf16.mxu0 0
        %1454 = vmatpush1.bf16.msra.mxu0 0
        %1455 = vmatprep.subr.bf16.mxu0 0
        %1456 = vmatpush1.bf16.msra.mxu0 0
        %1457 = vmatprep.subr.bf16.mxu0 0
        %1458 = vmatpush1.bf16.msra.mxu0 0
        %1459 = vmatprep.subr.bf16.mxu0 0
        %1460 = vmatpush1.bf16.msra.mxu0 0
        %1461 = vmatprep.subr.bf16.mxu0 0
        %1462 = vmatpush1.bf16.msra.mxu0 0
        %1463 = vmatprep.subr.bf16.mxu0 0
        %1464 = vmatpush1.bf16.msra.mxu0 0
        %1465 = vmatprep.subr.bf16.mxu0 0
        %1466 = vmatpush1.bf16.msra.mxu0 0
        %1467 = vmatprep.subr.bf16.mxu0 0
        %1468 = vmatpush1.bf16.msra.mxu0 0
        %1469 = vmatprep.subr.bf16.mxu0 0
        %1470 = vmatpush1.bf16.msra.mxu0 0
        %1471 = vmatprep.subr.bf16.mxu0 0
        %1472 = vmatpush1.bf16.msra.mxu0 0
        %1473 = vmatprep.subr.bf16.mxu0 0
        %1474 = vmatpush1.bf16.msra.mxu0 0
        %1475 = vmatprep.mubr.bf16.mxu0 0
        %1476 = vmatmul.mubr.bf16.gmra.mrb[0].mxu0 %v1438
        %v1477 = vpop.f32.mrb[0].mxu0
        %v1478 = vadd.f32 0.0, %v1477
        %v1479 = vpop.f32.mrb[0].mxu0
        %v1480 = vpop.f32.mrb[0].mxu0
        %v1481 = vpop.f32.mrb[0].mxu0
        %1482 = vdwg.mxu0
        %1483 = vst.msk [vmem:[#allocation2] sm:$0xff] %vm459, %v1142
        %1484 = vst.msk [vmem:[#allocation2 + $0x8] sm:$0xff] %vm459, %v1190
        %1485 = vst.msk [vmem:[#allocation2 + $0x10] sm:$0xff] %vm459, %v1238
        %1486 = vst.msk [vmem:[#allocation2 + $0x18] sm:$0xff] %vm459, %v1286
        %1487 = vst.msk [vmem:[#allocation2 + $0x20] sm:$0xff] %vm459, %v1334
        %1488 = vst.msk [vmem:[#allocation2 + $0x28] sm:$0xff] %vm459, %v1382
        %1489 = vst.msk [vmem:[#allocation2 + $0x30] sm:$0xff] %vm459, %v1430
        %1490 = vst.msk [vmem:[#allocation2 + $0x38] sm:$0xff] %vm459, %v1478
        %v1491 = vld [vmem:[#allocation2] sm:$0xff]
        %v1492 = vld [vmem:[#allocation2 + $0x8] sm:$0xff]
        %v1493 = vld [vmem:[#allocation2 + $0x10] sm:$0xff]
        %v1494 = vld [vmem:[#allocation2 + $0x18] sm:$0xff]
        %v1495 = vld [vmem:[#allocation2 + $0x20] sm:$0xff]
        %v1496 = vld [vmem:[#allocation2 + $0x28] sm:$0xff]
        %v1497 = vld [vmem:[#allocation2 + $0x30] sm:$0xff]
        %v1498 = vld [vmem:[#allocation2 + $0x38] sm:$0xff]
        %v1499 = vpack.c.bf16 %v1491, %v1491
        %v1500 = vpack.c.bf16 %v1492, %v1492
        %v1501 = vpack.c.bf16 %v1493, %v1493
        %v1502 = vpack.c.bf16 %v1494, %v1494
        %v1503 = vpack.c.bf16 %v1495, %v1495
        %v1504 = vpack.c.bf16 %v1496, %v1496
        %v1505 = vpack.c.bf16 %v1497, %v1497
        %v1506 = vpack.c.bf16 %v1498, %v1498
        %v1507 = vld [vmem:[#allocation6] sm:$0xff]
        %v1508 = vld [vmem:[#allocation6 + $0x8] sm:$0xff]
        %v1509 = vld [vmem:[#allocation6 + $0x10] sm:$0xff]
        %v1510 = vld [vmem:[#allocation6 + $0x18] sm:$0xff]
        %v1511 = vpack.c.bf16 %v1508, %v1507
        %v1512 = vpack.c.bf16 %v1510, %v1509
        %v1513 = vld [vmem:[%s5] sm:$0x1]
        %v1515 = vlaneseq
        %v1516 = vshrl.u32 %v1515, 7
        %v1517 = vsub.s32 0, %v1516
        %v1518 = vrot.slane %v1513, %v1517
        %v1528 = vunpack.c.l.b16 %v1499
        %v1529 = vunpack.c.l.b16 %v1500
        %v1530 = vunpack.c.l.b16 %v1501
        %v1531 = vunpack.c.l.b16 %v1502
        %v1532 = vunpack.c.l.b16 %v1503
        %v1533 = vunpack.c.l.b16 %v1504
        %v1534 = vunpack.c.l.b16 %v1505
        %v1535 = vunpack.c.l.b16 %v1506
        %v1536 = vpack.c.b16 %v1529, %v1528
        %v1537 = vpack.c.b16 %v1531, %v1530
        %v1538 = vpack.c.b16 %v1533, %v1532
        %v1539 = vpack.c.b16 %v1535, %v1534
        %v1541 = vsel %vm459, %v1536, 0
        %v1544 = vsel %vm459, %v1537, 0
        %v1547 = vsel %vm459, %v1538, 0
        %v1550 = vsel %vm459, %v1539, 0
        %1552 = vmatprep.subr.bf16.mxu0 0
        %1553 = vmatpush1.bf16.msra.mxu0 %v1511
        %1554 = vmatprep.subr.bf16.mxu0 0
        %1555 = vmatpush1.bf16.msra.mxu0 %v1512
        %1556 = vmatprep.subr.bf16.mxu0 0
        %1557 = vmatpush1.bf16.msra.mxu0 0
        %1558 = vmatprep.subr.bf16.mxu0 0
        %1559 = vmatpush1.bf16.msra.mxu0 0
        %1560 = vmatprep.subr.bf16.mxu0 0
        %1561 = vmatpush1.bf16.msra.mxu0 0
        %1562 = vmatprep.subr.bf16.mxu0 0
        %1563 = vmatpush1.bf16.msra.mxu0 0
        %1564 = vmatprep.subr.bf16.mxu0 0
        %1565 = vmatpush1.bf16.msra.mxu0 0
        %1566 = vmatprep.subr.bf16.mxu0 0
        %1567 = vmatpush1.bf16.msra.mxu0 0
        %1568 = vmatprep.subr.bf16.mxu0 0
        %1569 = vmatpush1.bf16.msra.mxu0 0
        %1570 = vmatprep.subr.bf16.mxu0 0
        %1571 = vmatpush1.bf16.msra.mxu0 0
        %1572 = vmatprep.subr.bf16.mxu0 0
        %1573 = vmatpush1.bf16.msra.mxu0 0
        %1574 = vmatprep.subr.bf16.mxu0 0
        %1575 = vmatpush1.bf16.msra.mxu0 0
        %1576 = vmatprep.subr.bf16.mxu0 0
        %1577 = vmatpush1.bf16.msra.mxu0 0
        %1578 = vmatprep.subr.bf16.mxu0 0
        %1579 = vmatpush1.bf16.msra.mxu0 0
        %1580 = vmatprep.subr.bf16.mxu0 0
        %1581 = vmatpush1.bf16.msra.mxu0 0
        %1582 = vmatprep.subr.bf16.mxu0 0
        %1583 = vmatpush1.bf16.msra.mxu0 0
        %1584 = vmatprep.mubr.bf16.mxu0 0
        %1585 = vmatmul.mubr.bf16.gmra.mrb[0].mxu0 %v1541
        %v1586 = vpop.f32.mrb[0].mxu0
        %v1587 = vadd.f32 %v1518, %v1586
        %v1588 = vpop.f32.mrb[0].mxu0
        %v1589 = vpop.f32.mrb[0].mxu0
        %v1590 = vadd.f32 %v1518, %v1589
        %v1591 = vpop.f32.mrb[0].mxu0
        %1592 = vmatprep.mubr.bf16.mxu0 0
        %1593 = vmatmul.mubr.bf16.gmra.mrb[0].mxu0 %v1544
        %v1594 = vpop.f32.mrb[0].mxu0
        %v1595 = vadd.f32 %v1518, %v1594
        %v1596 = vpop.f32.mrb[0].mxu0
        %v1597 = vpop.f32.mrb[0].mxu0
        %v1598 = vadd.f32 %v1518, %v1597
        %v1599 = vpop.f32.mrb[0].mxu0
        %1600 = vmatprep.mubr.bf16.mxu0 0
        %1601 = vmatmul.mubr.bf16.gmra.mrb[0].mxu0 %v1547
        %v1602 = vpop.f32.mrb[0].mxu0
        %v1603 = vadd.f32 %v1518, %v1602
        %v1604 = vpop.f32.mrb[0].mxu0
        %v1605 = vpop.f32.mrb[0].mxu0
        %v1606 = vadd.f32 %v1518, %v1605
        %v1607 = vpop.f32.mrb[0].mxu0
        %1608 = vmatprep.mubr.bf16.mxu0 0
        %1609 = vmatmul.mubr.bf16.gmra.mrb[0].mxu0 %v1550
        %v1610 = vpop.f32.mrb[0].mxu0
        %v1611 = vadd.f32 %v1518, %v1610
        %v1612 = vpop.f32.mrb[0].mxu0
        %v1613 = vpop.f32.mrb[0].mxu0
        %v1614 = vadd.f32 %v1518, %v1613
        %v1615 = vpop.f32.mrb[0].mxu0
        %1616 = vdwg.mxu0
        %v1617 = vadd.f32 %v402, %v1587
        %v1618 = vadd.f32 %v403, %v1590
        %v1619 = vadd.f32 %v404, %v1595
        %v1620 = vadd.f32 %v405, %v1598
        %v1621 = vadd.f32 %v406, %v1603
        %v1622 = vadd.f32 %v407, %v1606
        %v1623 = vadd.f32 %v408, %v1611
        %v1624 = vadd.f32 %v409, %v1614
        %v1625 = vsel %vm459, %v1617, 0.0
        %1626 = vadd.xlane.f32.xlu0 %v1625
        %v1627 = vpop.xlane.xlu0 %1626
        %v1628 = vsel %vm459, %v1618, 0.0
        %1629 = vadd.xlane.f32.xlu0 %v1628
        %v1630 = vpop.xlane.xlu0 %1629
        %v1631 = vsel %vm459, %v1619, 0.0
        %1632 = vadd.xlane.f32.xlu0 %v1631
        %v1633 = vpop.xlane.xlu0 %1632
        %v1634 = vsel %vm459, %v1620, 0.0
        %1635 = vadd.xlane.f32.xlu0 %v1634
        %v1636 = vpop.xlane.xlu0 %1635
        %v1637 = vsel %vm459, %v1621, 0.0
        %1638 = vadd.xlane.f32.xlu0 %v1637
        %v1639 = vpop.xlane.xlu0 %1638
        %v1640 = vsel %vm459, %v1622, 0.0
        %1641 = vadd.xlane.f32.xlu0 %v1640
        %v1642 = vpop.xlane.xlu0 %1641
        %v1643 = vsel %vm459, %v1623, 0.0
        %1644 = vadd.xlane.f32.xlu0 %v1643
        %v1645 = vpop.xlane.xlu0 %1644
        %v1646 = vsel %vm459, %v1624, 0.0
        %1647 = vadd.xlane.f32.xlu0 %v1646
        %v1648 = vpop.xlane.xlu0 %1647
        %v1649 = vrcp.pop 32.0
        %v1650 = vmul.f32 %v1627, %v1649
        %v1651 = vmul.f32 %v1630, %v1649
        %v1652 = vmul.f32 %v1633, %v1649
        %v1653 = vmul.f32 %v1636, %v1649
        %v1654 = vmul.f32 %v1639, %v1649
        %v1655 = vmul.f32 %v1642, %v1649
        %v1656 = vmul.f32 %v1645, %v1649
        %v1657 = vmul.f32 %v1648, %v1649
        %v1658 = vsub.f32 %v1617, %v1650
        %v1659 = vsub.f32 %v1618, %v1651
        %v1660 = vsub.f32 %v1619, %v1652
        %v1661 = vsub.f32 %v1620, %v1653
        %v1662 = vsub.f32 %v1621, %v1654
        %v1663 = vsub.f32 %v1622, %v1655
        %v1664 = vsub.f32 %v1623, %v1656
        %v1665 = vsub.f32 %v1624, %v1657
        %v1666 = vmul.f32 %v1658, %v1658
        %v1667 = vmul.f32 %v1659, %v1659
        %v1668 = vmul.f32 %v1660, %v1660
        %v1669 = vmul.f32 %v1661, %v1661
        %v1670 = vmul.f32 %v1662, %v1662
        %v1671 = vmul.f32 %v1663, %v1663
        %v1672 = vmul.f32 %v1664, %v1664
        %v1673 = vmul.f32 %v1665, %v1665
        %v1674 = vsel %vm459, %v1666, 0.0
        %1675 = vadd.xlane.f32.xlu0 %v1674
        %v1676 = vpop.xlane.xlu0 %1675
        %v1677 = vsel %vm459, %v1667, 0.0
        %1678 = vadd.xlane.f32.xlu0 %v1677
        %v1679 = vpop.xlane.xlu0 %1678
        %v1680 = vsel %vm459, %v1668, 0.0
        %1681 = vadd.xlane.f32.xlu0 %v1680
        %v1682 = vpop.xlane.xlu0 %1681
        %v1683 = vsel %vm459, %v1669, 0.0
        %1684 = vadd.xlane.f32.xlu0 %v1683
        %v1685 = vpop.xlane.xlu0 %1684
        %v1686 = vsel %vm459, %v1670, 0.0
        %1687 = vadd.xlane.f32.xlu0 %v1686
        %v1688 = vpop.xlane.xlu0 %1687
        %v1689 = vsel %vm459, %v1671, 0.0
        %1690 = vadd.xlane.f32.xlu0 %v1689
        %v1691 = vpop.xlane.xlu0 %1690
        %v1692 = vsel %vm459, %v1672, 0.0
        %1693 = vadd.xlane.f32.xlu0 %v1692
        %v1694 = vpop.xlane.xlu0 %1693
        %v1695 = vsel %vm459, %v1673, 0.0
        %1696 = vadd.xlane.f32.xlu0 %v1695
        %v1697 = vpop.xlane.xlu0 %1696
        %v1698 = vmul.f32 %v1676, %v1649
        %v1699 = vmul.f32 %v1679, %v1649
        %v1700 = vmul.f32 %v1682, %v1649
        %v1701 = vmul.f32 %v1685, %v1649
        %v1702 = vmul.f32 %v1688, %v1649
        %v1703 = vmul.f32 %v1691, %v1649
        %v1704 = vmul.f32 %v1694, %v1649
        %v1705 = vmul.f32 %v1697, %v1649
        %v1706 = vadd.f32 %v1698, 1e-05
        %v1707 = vadd.f32 %v1699, 1e-05
        %v1708 = vadd.f32 %v1700, 1e-05
        %v1709 = vadd.f32 %v1701, 1e-05
        %v1710 = vadd.f32 %v1702, 1e-05
        %v1711 = vadd.f32 %v1703, 1e-05
        %v1712 = vadd.f32 %v1704, 1e-05
        %v1713 = vadd.f32 %v1705, 1e-05
        %v1714 = vrsqrt.pop %v1706
        %v1715 = vrsqrt.pop %v1707
        %v1716 = vrsqrt.pop %v1708
        %v1717 = vrsqrt.pop %v1709
        %v1718 = vrsqrt.pop %v1710
        %v1719 = vrsqrt.pop %v1711
        %v1720 = vrsqrt.pop %v1712
        %v1721 = vrsqrt.pop %v1713
        %v1722 = vmul.f32 %v1658, %v1714
        %v1723 = vmul.f32 %v1659, %v1715
        %v1724 = vmul.f32 %v1660, %v1716
        %v1725 = vmul.f32 %v1661, %v1717
        %v1726 = vmul.f32 %v1662, %v1718
        %v1727 = vmul.f32 %v1663, %v1719
        %v1728 = vmul.f32 %v1664, %v1720
        %v1729 = vmul.f32 %v1665, %v1721
        %v1730 = vld [vmem:[%s6] sm:$0x1]
        %v1732 = vlaneseq
        %v1733 = vshrl.u32 %v1732, 7
        %v1734 = vsub.s32 0, %v1733
        %v1735 = vrot.slane %v1730, %v1734
        %v1737 = vmul.f32 %v1722, %v1735
        %v1738 = vmul.f32 %v1723, %v1735
        %v1739 = vmul.f32 %v1724, %v1735
        %v1740 = vmul.f32 %v1725, %v1735
        %v1741 = vmul.f32 %v1726, %v1735
        %v1742 = vmul.f32 %v1727, %v1735
        %v1743 = vmul.f32 %v1728, %v1735
        %v1744 = vmul.f32 %v1729, %v1735
        %v1745 = vld [vmem:[%s7] sm:$0x1]
        %v1747 = vlaneseq
        %v1748 = vshrl.u32 %v1747, 7
        %v1749 = vsub.s32 0, %v1748
        %v1750 = vrot.slane %v1745, %v1749
        %v1752 = vadd.f32 %v1737, %v1750
        %v1753 = vadd.f32 %v1738, %v1750
        %v1754 = vadd.f32 %v1739, %v1750
        %v1755 = vadd.f32 %v1740, %v1750
        %v1756 = vadd.f32 %v1741, %v1750
        %v1757 = vadd.f32 %v1742, %v1750
        %v1758 = vadd.f32 %v1743, %v1750
        %v1759 = vadd.f32 %v1744, %v1750
        %1760 = vst.msk [vmem:[%s380] sm:$0xff] %vm459, %v1752
        %1761 = vst.msk [vmem:[%s380 + $0x8] sm:$0xff] %vm459, %v1753
        %1762 = vst.msk [vmem:[%s380 + $0x10] sm:$0xff] %vm459, %v1754
        %1763 = vst.msk [vmem:[%s380 + $0x18] sm:$0xff] %vm459, %v1755
        %1764 = vst.msk [vmem:[%s380 + $0x20] sm:$0xff] %vm459, %v1756
        %1765 = vst.msk [vmem:[%s380 + $0x28] sm:$0xff] %vm459, %v1757
        %1766 = vst.msk [vmem:[%s380 + $0x30] sm:$0xff] %vm459, %v1758
        %1767 = vst.msk [vmem:[%s380 + $0x38] sm:$0xff] %vm459, %v1759
        %1768 = vst.msk [vmem:[%s399] sm:$0xff] %vm1001, %v1082
        %1769 = vst.msk [vmem:[%s399 + $0x8] sm:$0xff] %vm1001, %v1083
        %1770 = vst.msk [vmem:[%s399 + $0x10] sm:$0xff] %vm1001, %v1084
        %1771 = vst.msk [vmem:[%s399 + $0x18] sm:$0xff] %vm1001, %v1085
        %1772 = vst.msk [vmem:[%s399 + $0x20] sm:$0xff] %vm1001, %v1086
        %1773 = vst.msk [vmem:[%s399 + $0x28] sm:$0xff] %vm1001, %v1087
        %1774 = vst.msk [vmem:[%s399 + $0x30] sm:$0xff] %vm1001, %v1088
        %1775 = vst.msk [vmem:[%s399 + $0x38] sm:$0xff] %vm1001, %v1089
        %s1776 = sand.u32 %s214, 1
        %s1777 = scalar_lea.sflag [#allocation5], %s1776
        %s1778 = sand.u32 %s214, 1
        %s1779 = smul.addr %s1778, 64
        %s1780 = scalar_lea.vmem [#allocation8], %s1779
        %s1781 = smul.u32 8, %s28
        %p1782 = scmp.lt.s32.totalorder %s1781, 31
        %s1783 = scalar_select %p1782, %s1781, 31
        %s1784 = smul.addr %s1783, 8
        %s1785 = scalar_lea.vmem %s9, %s1784
        // Predicated region
        $region61: #{tpu_custom_call.1} parent=51 // pred_check
          %p1786 = pneg %p224
        $region62: #{tpu_custom_call.1} parent=51 // pred_check_branch
          %1788 = sbr.rel (%p1786) target = $region64
        $region63: #{tpu_custom_call.1} parent=51 // pred_region
          %s1789 = smul.u32 8, %s28
          %s1791 = ssub.s32 1024, 1024
          %1792 = vsyncadd %s1777, %s1791
          %s1793 = smul.addr %s1789, 128
          %s1794 = scalar_lea.hbm %s8, %s1793
          %s1795 = sshll.u32 %s1780, 4
          %s1796 = int_to_ptr.vmem [resolvable:$true] %s1795
          %1801 = dma.vmem_to_hbm [thread:$0]  %s1796, 1024, %s1794, %s1777, 128, 128, 8
        $region64: #{tpu_custom_call.1} parent=51 // pred_fallthru
          _
        // Predicated region
        $region65: #{tpu_custom_call.1} parent=51 // pred_check
          %p1802 = pneg %p250
        $region66: #{tpu_custom_call.1} parent=51 // pred_check_branch
          %1804 = sbr.rel (%p1802) target = $region68
        $region67: #{tpu_custom_call.1} parent=51 // pred_region
          %s1805 = smul.u32 8, %s28
        $region68: #{tpu_custom_call.1} parent=51 // pred_fallthru
          _
      $region52: #{tpu_custom_call.1} parent=5 // pred_fallthru
        _
      %p1806 = scmp.le.s32.totalorder 2, %s23
      // Predicated region
      $region69: #{tpu_custom_call.1} parent=5 // pred_check
        %p1807 = pneg %p1806
      $region70: #{tpu_custom_call.1} parent=5 // pred_check_branch
        %1809 = sbr.rel (%p1807) target = $region72
      $region71: #{tpu_custom_call.1} parent=5 // pred_region
        %s1810 = ssub.s32 %s23, 2
        // Predicated region
        $region73: #{tpu_custom_call.1} parent=71 // pred_check
          %p1811 = pneg %p230
        $region74: #{tpu_custom_call.1} parent=71 // pred_check_branch
          %1813 = sbr.rel (%p1811) target = $region76
        $region75: #{tpu_custom_call.1} parent=71 // pred_region
          %s1814 = sand.u32 %s215, 1
          %s1815 = scalar_lea.sflag [#allocation5], %s1814
          %s1816 = sand.u32 %s215, 1
          %s1817 = smul.addr %s1816, 64
          %s1818 = scalar_lea.vmem [#allocation8], %s1817
          %1819 = dma.done %s1815, 1024
        $region76: #{tpu_custom_call.1} parent=71 // pred_fallthru
          _
        // Predicated region
        $region77: #{tpu_custom_call.1} parent=71 // pred_check
          %p1820 = pneg %p256
        $region78: #{tpu_custom_call.1} parent=71 // pred_check_branch
          %1822 = sbr.rel (%p1820) target = $region80
        $region79: #{tpu_custom_call.1} parent=71 // pred_region
          %s1823 = smul.u32 8, %s29
          %p1824 = scmp.lt.s32.totalorder %s1823, 31
          %s1825 = scalar_select %p1824, %s1823, 31
          %s1826 = smul.addr %s1825, 8
          %s1827 = scalar_lea.vmem %s9, %s1826
        $region80: #{tpu_custom_call.1} parent=71 // pred_fallthru
          _
      $region72: #{tpu_custom_call.1} parent=5 // pred_fallthru
        _
    $region6: #{tpu_custom_call.1} parent=1 // loop_footer
      %s27 = sadd.s32 1, %s23
    $region7: #{tpu_custom_call.1} parent=1 // loop_footer_branch
      %22 = sbr.rel target = $region3
    $region8: #{tpu_custom_call.1} parent=1 // loop_exit
      _
    %1828 = vsyncpa [#allocation4], 1
    %s1829 = scalar_lea.sflag [#allocation4], 1
    %1830 = vsyncpa %s1829, 1
    %1831 = vsyncpa [#allocation7], 1
    %1832 = vsyncpa [#allocation5], 1
    %s1833 = scalar_lea.sflag [#allocation5], 1
    %1834 = vsyncpa %s1833, 1

</llo_original>
